<compile_context>
chip_gen: v5e
topology: v5e:2x2
jax: 0.10.0
libtpu: 0.0.40
codegen_flags: <defaults>
</compile_context>

<pallas_src>
import functools

import jax
import jax.numpy as jnp
from jax.experimental import pallas as pl
from jax.experimental.pallas import tpu as pltpu

BN_EPS = 1e-5
LN_EPS = 1e-5
NORM_EPS = 1e-12  # F.normalize default


def _round_up(x, m):
    return ((x + m - 1) // m) * m


def _default_vmem_limit():
    # Generation-aware scoped-VMEM request: leave headroom on v7x (64 MiB
    # physical per TC), use more of v5e/v6e's 128 MiB.
    try:
        kind = jax.devices()[0].device_kind.lower()
    except Exception:  # pragma: no cover - CPU fallback
        kind = ""
    if "v7" in kind:
        return 40 * 1024 * 1024
    return 80 * 1024 * 1024


_VMEM_LIMIT = _default_vmem_limit()


# --------------------------------------------------------------------------
# Pass A: fused [hidden | shortcut] projection + batch sum / sum-of-squares.
#   grid = (num_shards, tiles_per_shard); shard axis is "parallel" (v7x 2 TCs),
#   inner row-tile axis is "arbitrary" (sequential stats accumulation).
# --------------------------------------------------------------------------
def _hidden_stats_kernel(x_ref, wcat_ref, hs_ref, stats_ref, acc_ref, *, u_pad):
    i = pl.program_id(1)

    # bf16 x bf16 -> f32 on the MXU; single wide matmul over [W1 | Wsc].
    hs = jnp.dot(x_ref[...], wcat_ref[...], preferred_element_type=jnp.float32)
    hs_ref[...] = hs.astype(jnp.bfloat16)

    h = hs[:, :u_pad]  # hidden half (no bias on the first Linear)

    @pl.when(i == 0)
    def _():
        acc_ref[...] = jnp.zeros_like(acc_ref)

    # Fused moments in a VMEM scratch: row 0 = sum(h), row 1 = sum(h*h).
    acc_ref[0:1, :] += jnp.sum(h, axis=0, keepdims=True)
    acc_ref[1:2, :] += jnp.sum(h * h, axis=0, keepdims=True)

    @pl.when(i == pl.num_programs(1) - 1)
    def _():
        stats_ref[...] = acc_ref[...]   # single finalize store per shard


# --------------------------------------------------------------------------
# Pass B: BN -> ReLU -> Linear2 (+ shortcut + biases) -> LayerNorm -> L2 norm.
#   Fully "parallel" over row tiles.  exp(temperature) folded into feat16.
# --------------------------------------------------------------------------
def _feature_kernel(scale_ref, hs_ref, stats_ref, vec_ref, w2_ref,
                    feat32_ref, feat16_ref, *, n_real, u_real, u_pad, num_shards):
    # --- combine per-shard partial moments, BatchNorm training-mode stats ---
    st = stats_ref[...]
    s1 = st[0:1, :]
    s2 = st[1:2, :]
    for c in range(1, num_shards):
        s1 = s1 + st[8 * c:8 * c + 1, :]
        s2 = s2 + st[8 * c + 1:8 * c + 2, :]
    inv_n = 1.0 / float(n_real)
    mu_b = s1 * inv_n
    var_b = s2 * inv_n - mu_b * mu_b          # E[h^2] - mu^2 (see header note)

    vec = vec_ref[...]
    bn_w = vec[0:1, :]
    bn_b = vec[1:2, :]
    b_comb = vec[2:3, :]                       # b_nl2 + b_sc
    ln_w = vec[3:4, :]
    ln_b = vec[4:5, :]

    # Precomputed BN scale/shift -> 2 VALU ops per element.
    bn_scale = bn_w * jax.lax.rsqrt(var_b + BN_EPS)
    bn_shift = bn_b - mu_b * bn_scale

    hs = hs_ref[...]
    h = hs[:, :u_pad].astype(jnp.float32)
    sc = hs[:, u_pad:].astype(jnp.float32)

    h = jnp.maximum(h * bn_scale + bn_shift, 0.0)

    # Linear(units, units) on the MXU (bf16 feed, f32 accumulate) + shortcut.
    f = jnp.dot(h.astype(jnp.bfloat16), w2_ref[...],
                preferred_element_type=jnp.float32) + sc + b_comb

    # LayerNorm over the real u_real columns (padded feature cols are exactly 0).
    inv_u = 1.0 / float(u_real)
    mu = jnp.sum(f, axis=-1, keepdims=True) * inv_u
    ex2 = jnp.sum(f * f, axis=-1, keepdims=True) * inv_u
    var = ex2 - mu * mu
    f = (f - mu) * jax.lax.rsqrt(var + LN_EPS) * ln_w + ln_b

    # F.normalize(p=2, dim=-1): x / max(||x||, eps) == x * rsqrt(max(||x||^2, eps^2))
    ss = jnp.sum(f * f, axis=-1, keepdims=True)
    f = f * jax.lax.rsqrt(jnp.maximum(ss, NORM_EPS * NORM_EPS))

    feat32_ref[...] = f                                        # unscaled features
    feat16_ref[...] = (f * scale_ref[0]).astype(jnp.bfloat16)  # temperature folded in


# --------------------------------------------------------------------------
# Similarity: o[i, j] = <feat1_scaled[i], feat2[j]>, pure MXU, lane-dense stores.
# --------------------------------------------------------------------------
def _similarity_kernel(f1_ref, f2_ref, o_ref):
    o_ref[...] = jax.lax.dot_general(
        f1_ref[...], f2_ref[...],
        dimension_numbers=(((1,), (1,)), ((), ())),
        preferred_element_type=jnp.float32)


# --------------------------------------------------------------------------
# Host-side helpers
# --------------------------------------------------------------------------
def _pad2(a, rows, cols, dtype):
    out = jnp.zeros((rows, cols), dtype)
    return out.at[:a.shape[0], :a.shape[1]].set(a.astype(dtype))


def _pack_block_params(p, d_pad, u_pad):
    """Concatenate W1|Wsc (bf16, MXU operand) and pack small vectors into 1 slab."""
    d, u = p["w_nl1"].shape
    wcat = jnp.zeros((d_pad, 2 * u_pad), jnp.bfloat16)
    wcat = wcat.at[:d, :u].set(p["w_nl1"].astype(jnp.bfloat16))
    wcat = wcat.at[:d, u_pad:u_pad + u].set(p["w_sc"].astype(jnp.bfloat16))

    w2 = _pad2(p["w_nl2"], u_pad, u_pad, jnp.bfloat16)

    vec = jnp.zeros((8, u_pad), jnp.float32)
    vec = vec.at[0, :u].set(p["bn_w"].astype(jnp.float32))
    vec = vec.at[1, :u].set(p["bn_b"].astype(jnp.float32))
    vec = vec.at[2, :u].set((p["b_nl2"] + p["b_sc"]).astype(jnp.float32))
    vec = vec.at[3, :u].set(p["ln_w"].astype(jnp.float32))
    vec = vec.at[4, :u].set(p["ln_b"].astype(jnp.float32))
    return wcat, vec, w2


def _mi_linear_block_pallas(xp, wcat, vec, w2, scale, n_real, u_real,
                            tm, num_shards):
    n_pad, d_pad = xp.shape
    u_pad = wcat.shape[1] // 2
    ntiles = n_pad // tm
    tps = ntiles // num_shards  # tiles per shard

    # ---- Pass A: [h | sc] + per-shard batch statistics ----
    # TODO(synk): resident-weight BlockSpecs could use pipeline_mode=pl.Buffered(1)
    # to halve their VMEM footprint on v7x once that is verified to lower cleanly.
    kern_a = functools.partial(_hidden_stats_kernel, u_pad=u_pad)
    hs, stats = pl.pallas_call(
        kern_a,
        out_shape=(
            jax.ShapeDtypeStruct((n_pad, 2 * u_pad), jnp.bfloat16),
            jax.ShapeDtypeStruct((num_shards * 8, u_pad), jnp.float32),
        ),
        grid_spec=pltpu.PrefetchScalarGridSpec(
            num_scalar_prefetch=0,
            grid=(num_shards, tps),
            in_specs=[
                pl.BlockSpec((tm, d_pad), lambda c, i: (c * tps + i, 0)),   # x tile
                pl.BlockSpec((d_pad, 2 * u_pad), lambda c, i: (0, 0)),      # [W1|Wsc]
            ],
            out_specs=[
                pl.BlockSpec((tm, 2 * u_pad), lambda c, i: (c * tps + i, 0)),
                pl.BlockSpec((8, u_pad), lambda c, i: (c, 0)),               # stats/shard
            ],
            scratch_shapes=[pltpu.VMEM((8, u_pad), jnp.float32)],
        ),
        compiler_params=pltpu.CompilerParams(
            dimension_semantics=("parallel", "arbitrary"),
            vmem_limit_bytes=_VMEM_LIMIT),
    )(xp, wcat)

    # ---- Pass B: per-row-tile finalize (fully parallel) ----
    kern_b = functools.partial(_feature_kernel, n_real=n_real, u_real=u_real,
                               u_pad=u_pad, num_shards=num_shards)
    feat32, feat16 = pl.pallas_call(
        kern_b,
        out_shape=(
            jax.ShapeDtypeStruct((n_pad, u_pad), jnp.float32),
            jax.ShapeDtypeStruct((n_pad, u_pad), jnp.bfloat16),
        ),
        grid_spec=pltpu.PrefetchScalarGridSpec(
            num_scalar_prefetch=1,                       # temperature scale in SMEM
            grid=(ntiles,),
            in_specs=[
                pl.BlockSpec((tm, 2 * u_pad), lambda i, s: (i, 0)),          # [h|sc]
                pl.BlockSpec((num_shards * 8, u_pad), lambda i, s: (0, 0)),  # stats
                pl.BlockSpec((8, u_pad), lambda i, s: (0, 0)),               # packed vecs
                pl.BlockSpec((u_pad, u_pad), lambda i, s: (0, 0)),           # W2 (resident)
            ],
            out_specs=[
                pl.BlockSpec((tm, u_pad), lambda i, s: (i, 0)),              # feat f32
                pl.BlockSpec((tm, u_pad), lambda i, s: (i, 0)),              # feat bf16
            ],
        ),
        compiler_params=pltpu.CompilerParams(
            dimension_semantics=("parallel",),
            vmem_limit_bytes=_VMEM_LIMIT),
    )(scale, hs, stats, vec, w2)

    return feat32, feat16


def _similarity_pallas(f1_16, f2_16, tm, tn):
    n_pad, u_pad = f1_16.shape
    grid = (n_pad // tm, n_pad // tn)
    return pl.pallas_call(
        _similarity_kernel,
        out_shape=jax.ShapeDtypeStruct((n_pad, n_pad), jnp.float32),
        grid_spec=pltpu.PrefetchScalarGridSpec(
            num_scalar_prefetch=0,
            grid=grid,
            in_specs=[
                # row tile constant over the inner (j) axis -> reused, no re-DMA
                pl.BlockSpec((tm, u_pad), lambda i, j: (i, 0)),
                pl.BlockSpec((tn, u_pad), lambda i, j: (j, 0)),
            ],
            out_specs=pl.BlockSpec((tm, tn), lambda i, j: (i, j)),
        ),
        compiler_params=pltpu.CompilerParams(
            dimension_semantics=("parallel", "parallel"),
            vmem_limit_bytes=_VMEM_LIMIT),
    )(f1_16, f2_16)


@functools.partial(jax.jit, static_argnames=("block_rows",))
def global_discriminator_dot(params, features1, features2, block_rows=256):
    n = features1.shape[0]
    d1, d2 = features1.shape[1], features2.shape[1]
    u = params["img"]["w_nl2"].shape[0]

    # Feature-pass row tile (decoupled from the similarity tile).
    tm = min(block_rows, _round_up(n, 128))
    n_pad = _round_up(n, tm)
    ntiles = n_pad // tm
    # Leading "parallel" shard axis for Pass A stats (2 shards feed v7x's 2 TCs).
    num_shards = 2 if (ntiles >= 2 and ntiles % 2 == 0) else 1

    d1_pad, d2_pad = _round_up(d1, 128), _round_up(d2, 128)
    u_pad = _round_up(u, 128)

    x1p = _pad2(features1, n_pad, d1_pad, jnp.bfloat16)
    x2p = _pad2(features2, n_pad, d2_pad, jnp.bfloat16)
    wcat1, vec1, w2_1 = _pack_block_params(params["img"], d1_pad, u_pad)
    wcat2, vec2, w2_2 = _pack_block_params(params["text"], d2_pad, u_pad)

    # exp(temperature) computed once; folded into block-1 bf16 features in Pass B.
    scale = jnp.exp(params["temperature"]).reshape(1).astype(jnp.float32)
    unit = jnp.ones((1,), jnp.float32)

    f1_32, f1_16 = _mi_linear_block_pallas(x1p, wcat1, vec1, w2_1, scale,
                                           n, u, tm, num_shards)
    f2_32, f2_16 = _mi_linear_block_pallas(x2p, wcat2, vec2, w2_2, unit,
                                           n, u, tm, num_shards)

    # Similarity tile: largest lane-dense tile dividing n_pad (up to 512).
    if n_pad % 512 == 0:
        tsim = 512
    elif n_pad % 256 == 0:
        tsim = 256
    else:
        tsim = 128
    o_pad = _similarity_pallas(f1_16, f2_16, tsim, tsim)

    return o_pad[:n, :n], f1_32[:n, :u], f2_32[:n, :u]


# --------------------------------------------------------------------------
# Parameter construction mirroring the PyTorch __init__ (weights stored (in, out)).
# --------------------------------------------------------------------------
def init_params(key, image_sz, text_sz, units):
    def linear_w(k, fan_in, fan_out):
        bound = 1.0 / jnp.sqrt(fan_in)
        return jax.random.uniform(k, (fan_in, fan_out), jnp.float32, -bound, bound)

    def linear_b(k, fan_in, fan_out):
        bound = 1.0 / jnp.sqrt(fan_in)
        return jax.random.uniform(k, (fan_out,), jnp.float32, -bound, bound)

    def block_params(k, feature_sz):
        ks = jax.random.split(k, 5)
        w_sc = jax.random.uniform(ks[3], (feature_sz, units), jnp.float32, -0.01, 0.01)
        idx = jnp.arange(min(feature_sz, units))
        w_sc = w_sc.at[idx, idx].set(1.0)  # masked_fill(eye_mask, 1.0)
        return dict(
            w_nl1=linear_w(ks[0], feature_sz, units),       # Linear, bias=False
            bn_w=jnp.ones((units,), jnp.float32),           # BatchNorm1d defaults
            bn_b=jnp.zeros((units,), jnp.float32),
            w_nl2=linear_w(ks[1], units, units),
            b_nl2=linear_b(ks[2], units, units),
            w_sc=w_sc,
            b_sc=linear_b(ks[4], feature_sz, units),
            ln_w=jnp.ones((units,), jnp.float32),           # LayerNorm defaults
            ln_b=jnp.zeros((units,), jnp.float32),
        )

    k_img, k_txt = jax.random.split(key)
    return dict(
        img=block_params(k_img, image_sz),
        text=block_params(k_txt, text_sz),
        temperature=jnp.asarray(jnp.log(1.0 / 0.07), jnp.float32),
    )


def _reference(params, x1, x2):
    """Pure-JAX f32 reference of the PyTorch forward (training-mode BatchNorm)."""
    def block(p, x):
        h = x @ p["w_nl1"]
        mu = h.mean(0, keepdims=True)
        var = ((h - mu) ** 2).mean(0, keepdims=True)
        h = (h - mu) / jnp.sqrt(var + BN_EPS) * p["bn_w"] + p["bn_b"]
        h = jnp.maximum(h, 0.0)
        h = h @ p["w_nl2"] + p["b_nl2"]
        sc = x @ p["w_sc"] + p["b_sc"]
        f = h + sc
        m = f.mean(-1, keepdims=True)
        v = ((f - m) ** 2).mean(-1, keepdims=True)
        return (f - m) / jnp.sqrt(v + LN_EPS) * p["ln_w"] + p["ln_b"]

    f1 = block(params["img"], x1)
    f2 = block(params["text"], x2)
    f1 = f1 / jnp.maximum(jnp.linalg.norm(f1, axis=-1, keepdims=True), NORM_EPS)
    f2 = f2 / jnp.maximum(jnp.linalg.norm(f2, axis=-1, keepdims=True), NORM_EPS)
    o = (f1 @ f2.T) * jnp.exp(params["temperature"])
    return o, f1, f2


if __name__ == "__main__":
    N, IMAGE_SZ, TEXT_SZ, UNITS = 8, 64, 24, 256

    key = jax.random.PRNGKey(0)
    k_params, k_x1, k_x2 = jax.random.split(key, 3)
    params = init_params(k_params, IMAGE_SZ, TEXT_SZ, UNITS)
    x1 = jax.random.normal(k_x1, (N, IMAGE_SZ), jnp.float32)
    x2 = jax.random.normal(k_x2, (N, TEXT_SZ), jnp.float32)

    o, f1, f2 = global_discriminator_dot(params, x1, x2)
    jax.block_until_ready((o, f1, f2))

    o_ref, f1_ref, f2_ref = _reference(params, x1, x2)
    assert o.shape == (N, N) and f1.shape == (N, UNITS) and f2.shape == (N, UNITS)
    # Tolerances account for bf16 MXU operands and the bf16 [h|sc] intermediate
    # (all statistics / normalization math is f32).
    assert jnp.allclose(o, o_ref, atol=1.5e-1, rtol=3e-2), \
        f"o mismatch: {jnp.max(jnp.abs(o - o_ref))}"
    assert jnp.allclose(f1, f1_ref, atol=2e-2, rtol=2e-2), \
        f"f1 mismatch: {jnp.max(jnp.abs(f1 - f1_ref))}"
    assert jnp.allclose(f2, f2_ref, atol=2e-2, rtol=2e-2), \
        f"f2 mismatch: {jnp.max(jnp.abs(f2 - f2_ref))}"

    print("KERNEL_OK")
</pallas_src>

<mosaic_0001>
module attributes {stable_mosaic.version = 11 : i64} {
  func.func @_hidden_stats_kernel(%arg0: i32, %arg1: i32, %arg2: memref<128x128xbf16, #tpu.memory_space<vmem>>, %arg3: memref<128x512xbf16, #tpu.memory_space<vmem>>, %arg4: memref<128x512xbf16, #tpu.memory_space<vmem>>, %arg5: memref<8x256xf32, #tpu.memory_space<vmem>>, %arg6: memref<8x256xf32, #tpu.memory_space<vmem>>) attributes {dimension_semantics = [#tpu.dimension_semantics<parallel>, #tpu.dimension_semantics<arbitrary>], iteration_bounds = array<i64: 1, 1>, scalar_prefetch = 0 : i64, scratch_operands = 1 : i64, tpu.core_type = #tpu.core_type<tc>, window_params = [{transform_indices = @transform_0, window_bounds = array<i64: 128, 128>}, {pipeline_mode = #tpu.pipeline_mode<synchronous>, transform_indices = @transform_1, window_bounds = array<i64: 128, 512>}, {transform_indices = @transform_2, window_bounds = array<i64: 128, 512>}, {transform_indices = @transform_3, window_bounds = array<i64: 8, 256>}]} {
    %c0 = arith.constant 0 : index
    %c0_0 = arith.constant 0 : index
    %0 = vector.load %arg2[%c0, %c0_0] : memref<128x128xbf16, #tpu.memory_space<vmem>>, vector<128x128xbf16>
    %c0_1 = arith.constant 0 : index
    %c0_2 = arith.constant 0 : index
    %1 = vector.load %arg3[%c0_1, %c0_2] : memref<128x512xbf16, #tpu.memory_space<vmem>>, vector<128x512xbf16>
    %cst = arith.constant dense<0.000000e+00> : vector<128x512xf32>
    %2 = tpu.matmul %0, %1, %cst {dimension_numbers = #tpu.dot_dimension_numbers<[1], [0], [0], [1], [0, 0, 1, 1], [], []>} : vector<128x128xbf16>, vector<128x512xbf16>, vector<128x512xf32> -> vector<128x512xf32>
    %3 = arith.truncf %2 : vector<128x512xf32> to vector<128x512xbf16>
    %c0_3 = arith.constant 0 : index
    %c0_4 = arith.constant 0 : index
    %4 = vector.load %arg4[%c0_3, %c0_4] : memref<128x512xbf16, #tpu.memory_space<vmem>>, vector<128x512xbf16>
    tpu.vector_store %arg4[%c0_3, %c0_4], %3 {strides = array<i32>} : memref<128x512xbf16, #tpu.memory_space<vmem>>, vector<128x512xbf16>,
    %5 = vector.extract_strided_slice %2 {offsets = [0, 0], sizes = [128, 256], strides = [1, 1]} : vector<128x512xf32> to vector<128x256xf32>
    %c0_i32 = arith.constant 0 : i32
    %6 = arith.cmpi eq, %arg1, %c0_i32 : i32
    %7 = arith.extui %6 : i1 to i32
    %c0_i32_5 = arith.constant 0 : i32
    %8 = arith.cmpi ne, %7, %c0_i32_5 : i32
    scf.if %8 {
      %cst_17 = arith.constant 0.000000e+00 : f32
      %23 = vector.broadcast %cst_17 : f32 to vector<8x256xf32>
      %c0_18 = arith.constant 0 : index
      %c0_19 = arith.constant 0 : index
      %24 = vector.load %arg6[%c0_18, %c0_19] : memref<8x256xf32, #tpu.memory_space<vmem>>, vector<8x256xf32>
      tpu.vector_store %arg6[%c0_18, %c0_19], %23 {strides = array<i32>} : memref<8x256xf32, #tpu.memory_space<vmem>>, vector<8x256xf32>,
    } else {
    }
    %c0_6 = arith.constant 0 : index
    %c0_7 = arith.constant 0 : index
    %9 = vector.load %arg6[%c0_6, %c0_7] : memref<8x256xf32, #tpu.memory_space<vmem>>, vector<1x256xf32>
    %cst_8 = arith.constant dense<0.000000e+00> : vector<256xf32>
    %10 = vector.multi_reduction <add>, %5, %cst_8 [0] : vector<128x256xf32> to vector<256xf32>
    %11 = vector.shape_cast %10 : vector<256xf32> to vector<1x256xf32>
    %12 = arith.addf %9, %11 : vector<1x256xf32>
    %c0_9 = arith.constant 0 : index
    %c0_10 = arith.constant 0 : index
    %13 = vector.load %arg6[%c0_9, %c0_10] : memref<8x256xf32, #tpu.memory_space<vmem>>, vector<1x256xf32>
    tpu.vector_store %arg6[%c0_9, %c0_10], %12 {strides = array<i32>} : memref<8x256xf32, #tpu.memory_space<vmem>>, vector<1x256xf32>,
    %c1 = arith.constant 1 : index
    %c0_11 = arith.constant 0 : index
    %14 = vector.load %arg6[%c1, %c0_11] : memref<8x256xf32, #tpu.memory_space<vmem>>, vector<1x256xf32>
    %15 = arith.mulf %5, %5 : vector<128x256xf32>
    %cst_12 = arith.constant dense<0.000000e+00> : vector<256xf32>
    %16 = vector.multi_reduction <add>, %15, %cst_12 [0] : vector<128x256xf32> to vector<256xf32>
    %17 = vector.shape_cast %16 : vector<256xf32> to vector<1x256xf32>
    %18 = arith.addf %14, %17 : vector<1x256xf32>
    %c1_13 = arith.constant 1 : index
    %c0_14 = arith.constant 0 : index
    %19 = vector.load %arg6[%c1_13, %c0_14] : memref<8x256xf32, #tpu.memory_space<vmem>>, vector<1x256xf32>
    tpu.vector_store %arg6[%c1_13, %c0_14], %18 {strides = array<i32>} : memref<8x256xf32, #tpu.memory_space<vmem>>, vector<1x256xf32>,
    %c0_i32_15 = arith.constant 0 : i32
    %20 = arith.cmpi eq, %arg1, %c0_i32_15 : i32
    %21 = arith.extui %20 : i1 to i32
    %c0_i32_16 = arith.constant 0 : i32
    %22 = arith.cmpi ne, %21, %c0_i32_16 : i32
    scf.if %22 {
      %c0_17 = arith.constant 0 : index
      %c0_18 = arith.constant 0 : index
      %23 = vector.load %arg6[%c0_17, %c0_18] : memref<8x256xf32, #tpu.memory_space<vmem>>, vector<8x256xf32>
      %c0_19 = arith.constant 0 : index
      %c0_20 = arith.constant 0 : index
      %24 = vector.load %arg5[%c0_19, %c0_20] : memref<8x256xf32, #tpu.memory_space<vmem>>, vector<8x256xf32>
      tpu.vector_store %arg5[%c0_19, %c0_20], %23 {strides = array<i32>} : memref<8x256xf32, #tpu.memory_space<vmem>>, vector<8x256xf32>,
    } else {
    }
    return
  }
  func.func @transform_0(%arg0: i32, %arg1: i32) -> (i32, i32) {
    %c1_i32 = arith.constant 1 : i32
    %0 = arith.muli %arg0, %c1_i32 : i32
    %1 = arith.addi %0, %arg1 : i32
    %c0_i32 = arith.constant 0 : i32
    %c0_i32_0 = arith.constant 0 : i32
    return %1, %c0_i32 : i32, i32
  }
  func.func @transform_1(%arg0: i32, %arg1: i32) -> (i32, i32) {
    %c0_i32 = arith.constant 0 : i32
    %c0_i32_0 = arith.constant 0 : i32
    %c0_i32_1 = arith.constant 0 : i32
    return %c0_i32, %c0_i32_0 : i32, i32
  }
  func.func @transform_2(%arg0: i32, %arg1: i32) -> (i32, i32) {
    %c1_i32 = arith.constant 1 : i32
    %0 = arith.muli %arg0, %c1_i32 : i32
    %1 = arith.addi %0, %arg1 : i32
    %c0_i32 = arith.constant 0 : i32
    %c0_i32_0 = arith.constant 0 : i32
    return %1, %c0_i32 : i32, i32
  }
  func.func @transform_3(%arg0: i32, %arg1: i32) -> (i32, i32) {
    %c0_i32 = arith.constant 0 : i32
    %c0_i32_0 = arith.constant 0 : i32
    return %arg0, %c0_i32 : i32, i32
  }
}

module attributes {stable_mosaic.version = 11 : i64} {
  func.func @_feature_kernel(%arg0: i32, %arg1: memref<1xf32, #tpu.memory_space<smem>>, %arg2: memref<128x512xbf16, #tpu.memory_space<vmem>>, %arg3: memref<8x256xf32, #tpu.memory_space<vmem>>, %arg4: memref<8x256xf32, #tpu.memory_space<vmem>>, %arg5: memref<256x256xbf16, #tpu.memory_space<vmem>>, %arg6: memref<128x256xf32, #tpu.memory_space<vmem>>, %arg7: memref<128x256xbf16, #tpu.memory_space<vmem>>) attributes {dimension_semantics = [#tpu.dimension_semantics<parallel>], iteration_bounds = array<i64: 1>, scalar_prefetch = 1 : i64, scratch_operands = 0 : i64, tpu.core_type = #tpu.core_type<tc>, window_params = [{transform_indices = @transform_0, window_bounds = array<i64: 128, 512>}, {pipeline_mode = #tpu.pipeline_mode<synchronous>, transform_indices = @transform_1, window_bounds = array<i64: 8, 256>}, {pipeline_mode = #tpu.pipeline_mode<synchronous>, transform_indices = @transform_2, window_bounds = array<i64: 8, 256>}, {pipeline_mode = #tpu.pipeline_mode<synchronous>, transform_indices = @transform_3, window_bounds = array<i64: 256, 256>}, {transform_indices = @transform_4, window_bounds = array<i64: 128, 256>}, {transform_indices = @transform_5, window_bounds = array<i64: 128, 256>}]} {
    %c0 = arith.constant 0 : index
    %c0_0 = arith.constant 0 : index
    %0 = vector.load %arg3[%c0, %c0_0] : memref<8x256xf32, #tpu.memory_space<vmem>>, vector<8x256xf32>
    %1 = vector.extract_strided_slice %0 {offsets = [0, 0], sizes = [1, 256], strides = [1, 1]} : vector<8x256xf32> to vector<1x256xf32>
    %2 = vector.extract_strided_slice %0 {offsets = [1, 0], sizes = [1, 256], strides = [1, 1]} : vector<8x256xf32> to vector<1x256xf32>
    %cst = arith.constant 1.250000e-01 : f32
    %3 = vector.broadcast %cst : f32 to vector<1x256xf32>
    %4 = arith.mulf %1, %3 : vector<1x256xf32>
    %cst_1 = arith.constant 1.250000e-01 : f32
    %5 = vector.broadcast %cst_1 : f32 to vector<1x256xf32>
    %6 = arith.mulf %2, %5 : vector<1x256xf32>
    %7 = arith.mulf %4, %4 : vector<1x256xf32>
    %8 = arith.subf %6, %7 : vector<1x256xf32>
    %c0_2 = arith.constant 0 : index
    %c0_3 = arith.constant 0 : index
    %9 = vector.load %arg4[%c0_2, %c0_3] : memref<8x256xf32, #tpu.memory_space<vmem>>, vector<8x256xf32>
    %10 = vector.extract_strided_slice %9 {offsets = [0, 0], sizes = [1, 256], strides = [1, 1]} : vector<8x256xf32> to vector<1x256xf32>
    %11 = vector.extract_strided_slice %9 {offsets = [1, 0], sizes = [1, 256], strides = [1, 1]} : vector<8x256xf32> to vector<1x256xf32>
    %12 = vector.extract_strided_slice %9 {offsets = [2, 0], sizes = [1, 256], strides = [1, 1]} : vector<8x256xf32> to vector<1x256xf32>
    %13 = vector.extract_strided_slice %9 {offsets = [3, 0], sizes = [1, 256], strides = [1, 1]} : vector<8x256xf32> to vector<1x256xf32>
    %14 = vector.extract_strided_slice %9 {offsets = [4, 0], sizes = [1, 256], strides = [1, 1]} : vector<8x256xf32> to vector<1x256xf32>
    %cst_4 = arith.constant 9.99999974E-6 : f32
    %15 = vector.broadcast %cst_4 : f32 to vector<1x256xf32>
    %16 = arith.addf %8, %15 : vector<1x256xf32>
    %17 = math.rsqrt %16 : vector<1x256xf32>
    %18 = arith.mulf %10, %17 : vector<1x256xf32>
    %19 = arith.mulf %4, %18 : vector<1x256xf32>
    %20 = arith.subf %11, %19 : vector<1x256xf32>
    %c0_5 = arith.constant 0 : index
    %c0_6 = arith.constant 0 : index
    %21 = vector.load %arg2[%c0_5, %c0_6] : memref<128x512xbf16, #tpu.memory_space<vmem>>, vector<128x512xbf16>
    %22 = vector.extract_strided_slice %21 {offsets = [0, 0], sizes = [128, 256], strides = [1, 1]} : vector<128x512xbf16> to vector<128x256xbf16>
    %23 = arith.extf %22 : vector<128x256xbf16> to vector<128x256xf32>
    %24 = vector.extract_strided_slice %21 {offsets = [0, 256], sizes = [128, 256], strides = [1, 1]} : vector<128x512xbf16> to vector<128x256xbf16>
    %25 = arith.extf %24 : vector<128x256xbf16> to vector<128x256xf32>
    %26 = vector.broadcast %18 : vector<1x256xf32> to vector<128x256xf32>
    %27 = arith.mulf %23, %26 : vector<128x256xf32>
    %28 = vector.broadcast %20 : vector<1x256xf32> to vector<128x256xf32>
    %29 = arith.addf %27, %28 : vector<128x256xf32>
    %cst_7 = arith.constant 0.000000e+00 : f32
    %30 = vector.broadcast %cst_7 : f32 to vector<128x256xf32>
    %31 = arith.maximumf %29, %30 : vector<128x256xf32>
    %32 = arith.truncf %31 : vector<128x256xf32> to vector<128x256xbf16>
    %c0_8 = arith.constant 0 : index
    %c0_9 = arith.constant 0 : index
    %33 = vector.load %arg5[%c0_8, %c0_9] : memref<256x256xbf16, #tpu.memory_space<vmem>>, vector<256x256xbf16>
    %cst_10 = arith.constant dense<0.000000e+00> : vector<128x256xf32>
    %34 = tpu.matmul %32, %33, %cst_10 {dimension_numbers = #tpu.dot_dimension_numbers<[1], [0], [0], [1], [0, 0, 1, 1], [], []>} : vector<128x256xbf16>, vector<256x256xbf16>, vector<128x256xf32> -> vector<128x256xf32>
    %35 = arith.addf %34, %25 : vector<128x256xf32>
    %36 = vector.broadcast %12 : vector<1x256xf32> to vector<128x256xf32>
    %37 = arith.addf %35, %36 : vector<128x256xf32>
    %cst_11 = arith.constant dense<0.000000e+00> : vector<128xf32>
    %38 = vector.multi_reduction <add>, %37, %cst_11 [1] : vector<128x256xf32> to vector<128xf32>
    %39 = vector.shape_cast %38 : vector<128xf32> to vector<128x1xf32>
    %cst_12 = arith.constant 3.906250e-03 : f32
    %40 = vector.broadcast %cst_12 : f32 to vector<128x1xf32>
    %41 = arith.mulf %39, %40 : vector<128x1xf32>
    %42 = arith.mulf %37, %37 : vector<128x256xf32>
    %cst_13 = arith.constant dense<0.000000e+00> : vector<128xf32>
    %43 = vector.multi_reduction <add>, %42, %cst_13 [1] : vector<128x256xf32> to vector<128xf32>
    %44 = vector.shape_cast %43 : vector<128xf32> to vector<128x1xf32>
    %cst_14 = arith.constant 3.906250e-03 : f32
    %45 = vector.broadcast %cst_14 : f32 to vector<128x1xf32>
    %46 = arith.mulf %44, %45 : vector<128x1xf32>
    %47 = arith.mulf %41, %41 : vector<128x1xf32>
    %48 = arith.subf %46, %47 : vector<128x1xf32>
    %49 = vector.broadcast %41 : vector<128x1xf32> to vector<128x256xf32>
    %50 = arith.subf %37, %49 : vector<128x256xf32>
    %cst_15 = arith.constant 9.99999974E-6 : f32
    %51 = vector.broadcast %cst_15 : f32 to vector<128x1xf32>
    %52 = arith.addf %48, %51 : vector<128x1xf32>
    %53 = math.rsqrt %52 : vector<128x1xf32>
    %54 = vector.broadcast %53 : vector<128x1xf32> to vector<128x256xf32>
    %55 = arith.mulf %50, %54 : vector<128x256xf32>
    %56 = vector.broadcast %13 : vector<1x256xf32> to vector<128x256xf32>
    %57 = arith.mulf %55, %56 : vector<128x256xf32>
    %58 = vector.broadcast %14 : vector<1x256xf32> to vector<128x256xf32>
    %59 = arith.addf %57, %58 : vector<128x256xf32>
    %60 = arith.mulf %59, %59 : vector<128x256xf32>
    %cst_16 = arith.constant dense<0.000000e+00> : vector<128xf32>
    %61 = vector.multi_reduction <add>, %60, %cst_16 [1] : vector<128x256xf32> to vector<128xf32>
    %62 = vector.shape_cast %61 : vector<128xf32> to vector<128x1xf32>
    %cst_17 = arith.constant 1.000000e-24 : f32
    %63 = vector.broadcast %cst_17 : f32 to vector<128x1xf32>
    %64 = arith.maximumf %62, %63 : vector<128x1xf32>
    %65 = math.rsqrt %64 : vector<128x1xf32>
    %66 = vector.broadcast %65 : vector<128x1xf32> to vector<128x256xf32>
    %67 = arith.mulf %59, %66 : vector<128x256xf32>
    %c0_18 = arith.constant 0 : index
    %c0_19 = arith.constant 0 : index
    %68 = vector.load %arg6[%c0_18, %c0_19] : memref<128x256xf32, #tpu.memory_space<vmem>>, vector<128x256xf32>
    tpu.vector_store %arg6[%c0_18, %c0_19], %67 {strides = array<i32>} : memref<128x256xf32, #tpu.memory_space<vmem>>, vector<128x256xf32>,
    %c0_20 = arith.constant 0 : index
    %69 = memref.load %arg1[%c0_20] : memref<1xf32, #tpu.memory_space<smem>>
    %70 = vector.broadcast %69 : f32 to vector<128x256xf32>
    %71 = arith.mulf %67, %70 : vector<128x256xf32>
    %72 = arith.truncf %71 : vector<128x256xf32> to vector<128x256xbf16>
    %c0_21 = arith.constant 0 : index
    %c0_22 = arith.constant 0 : index
    %73 = vector.load %arg7[%c0_21, %c0_22] : memref<128x256xbf16, #tpu.memory_space<vmem>>, vector<128x256xbf16>
    tpu.vector_store %arg7[%c0_21, %c0_22], %72 {strides = array<i32>} : memref<128x256xbf16, #tpu.memory_space<vmem>>, vector<128x256xbf16>,
    return
  }
  func.func @transform_0(%arg0: i32, %arg1: memref<1xf32, #tpu.memory_space<smem>>) -> (i32, i32) {
    %c0_i32 = arith.constant 0 : i32
    %c0_i32_0 = arith.constant 0 : i32
    return %arg0, %c0_i32 : i32, i32
  }
  func.func @transform_1(%arg0: i32, %arg1: memref<1xf32, #tpu.memory_space<smem>>) -> (i32, i32) {
    %c0_i32 = arith.constant 0 : i32
    %c0_i32_0 = arith.constant 0 : i32
    %c0_i32_1 = arith.constant 0 : i32
    return %c0_i32, %c0_i32_0 : i32, i32
  }
  func.func @transform_2(%arg0: i32, %arg1: memref<1xf32, #tpu.memory_space<smem>>) -> (i32, i32) {
    %c0_i32 = arith.constant 0 : i32
    %c0_i32_0 = arith.constant 0 : i32
    %c0_i32_1 = arith.constant 0 : i32
    return %c0_i32, %c0_i32_0 : i32, i32
  }
  func.func @transform_3(%arg0: i32, %arg1: memref<1xf32, #tpu.memory_space<smem>>) -> (i32, i32) {
    %c0_i32 = arith.constant 0 : i32
    %c0_i32_0 = arith.constant 0 : i32
    %c0_i32_1 = arith.constant 0 : i32
    return %c0_i32, %c0_i32_0 : i32, i32
  }
  func.func @transform_4(%arg0: i32, %arg1: memref<1xf32, #tpu.memory_space<smem>>) -> (i32, i32) {
    %c0_i32 = arith.constant 0 : i32
    %c0_i32_0 = arith.constant 0 : i32
    return %arg0, %c0_i32 : i32, i32
  }
  func.func @transform_5(%arg0: i32, %arg1: memref<1xf32, #tpu.memory_space<smem>>) -> (i32, i32) {
    %c0_i32 = arith.constant 0 : i32
    %c0_i32_0 = arith.constant 0 : i32
    return %arg0, %c0_i32 : i32, i32
  }
}

module attributes {stable_mosaic.version = 11 : i64} {
  func.func @_similarity_kernel(%arg0: i32, %arg1: i32, %arg2: memref<128x256xbf16, #tpu.memory_space<vmem>>, %arg3: memref<128x256xbf16, #tpu.memory_space<vmem>>, %arg4: memref<128x128xf32, #tpu.memory_space<vmem>>) attributes {dimension_semantics = [#tpu.dimension_semantics<parallel>, #tpu.dimension_semantics<parallel>], iteration_bounds = array<i64: 1, 1>, scalar_prefetch = 0 : i64, scratch_operands = 0 : i64, tpu.core_type = #tpu.core_type<tc>, window_params = [{transform_indices = @transform_0, window_bounds = array<i64: 128, 256>}, {transform_indices = @transform_1, window_bounds = array<i64: 128, 256>}, {transform_indices = @transform_2, window_bounds = array<i64: 128, 128>}]} {
    %c0 = arith.constant 0 : index
    %c0_0 = arith.constant 0 : index
    %0 = vector.load %arg2[%c0, %c0_0] : memref<128x256xbf16, #tpu.memory_space<vmem>>, vector<128x256xbf16>
    %c0_1 = arith.constant 0 : index
    %c0_2 = arith.constant 0 : index
    %1 = vector.load %arg3[%c0_1, %c0_2] : memref<128x256xbf16, #tpu.memory_space<vmem>>, vector<128x256xbf16>
    %cst = arith.constant dense<0.000000e+00> : vector<128x128xf32>
    %2 = tpu.matmul %0, %1, %cst {dimension_numbers = #tpu.dot_dimension_numbers<[1], [1], [0], [0], [0, 0, 1, 0], [], []>} : vector<128x256xbf16>, vector<128x256xbf16>, vector<128x128xf32> -> vector<128x128xf32>
    %c0_3 = arith.constant 0 : index
    %c0_4 = arith.constant 0 : index
    %3 = vector.load %arg4[%c0_3, %c0_4] : memref<128x128xf32, #tpu.memory_space<vmem>>, vector<128x128xf32>
    tpu.vector_store %arg4[%c0_3, %c0_4], %2 {strides = array<i32>} : memref<128x128xf32, #tpu.memory_space<vmem>>, vector<128x128xf32>,
    return
  }
  func.func @transform_0(%arg0: i32, %arg1: i32) -> (i32, i32) {
    %c0_i32 = arith.constant 0 : i32
    %c0_i32_0 = arith.constant 0 : i32
    return %arg0, %c0_i32 : i32, i32
  }
  func.func @transform_1(%arg0: i32, %arg1: i32) -> (i32, i32) {
    %c0_i32 = arith.constant 0 : i32
    %c0_i32_0 = arith.constant 0 : i32
    return %arg1, %c0_i32 : i32, i32
  }
  func.func @transform_2(%arg0: i32, %arg1: i32) -> (i32, i32) {
    %c0_i32 = arith.constant 0 : i32
    return %arg0, %arg1 : i32, i32
  }
}

</mosaic_0001>

<llo_original>
// kernel: global_discriminator_dot.5
$region0: #{global_discriminator_dot.5}
  #allocation0 [shape = 'u32[]', space=smem, size = 0x4, offset = 0x4, fixed_abs, tag = 'smem constant byte address 0x4 - core index']
  #allocation1 [shape = 'u32[72,128]{1,0:T(1,128)}', space=vmem, size = 0x9000, scoped, tag = 'internal scratch']
  #allocation2 [shape = 'f32[8,256]{1,0:T(8,128)}', space=vmem, size = 0x2000, scoped, tag = 'scratch operand']
  %s0 = inlined_call_operand.vmem [shape: bf16[128,128], index: 0, kind: input, shape index: {}]
  %s1 = inlined_call_operand.vmem [shape: bf16[128,512], index: 1, kind: input, shape index: {}]
  %s2 = inlined_call_operand.vmem [shape: bf16[128,512], index: 2, kind: output, shape index: {0}]
  %s3 = inlined_call_operand.vmem [shape: f32[8,256], index: 3, kind: output, shape index: {1}]
  %4 = xla_tuple %s2, %s3
  %s5 = sld [smem:[#allocation0]]
  $region34: #{global_discriminator_dot.5} parent=0
    _
  %s7 = ssub.s32 1, %s5
  %s8 = scalar_select 0, %s7, %s5
  // Predicated region
  $region2: #{global_discriminator_dot.5} parent=0 // pred_check
    _
  $region3: #{global_discriminator_dot.5} parent=0 // pred_check_branch
    %10 = sbr.rel (0) target = $region5
  $region4: #{global_discriminator_dot.5} parent=0 // pred_region
    %s11 = sadd.s32 0, 0
    %s12 = smul.u32 16, %s11
    %p13 = scmp.lt.s32.totalorder %s12, 15
    %s14 = scalar_select %p13, %s12, 15
    %s15 = smul.addr %s14, 4
    %s16 = scalar_lea.vmem %s0, %s15
    %s17 = sadd.s32 0, 0
    %s18 = smul.u32 16, %s17
  $region5: #{global_discriminator_dot.5} parent=0 // pred_fallthru
    _
  // Predicated region
  $region6: #{global_discriminator_dot.5} parent=0 // pred_check
    _
  $region7: #{global_discriminator_dot.5} parent=0 // pred_check_branch
    %20 = sbr.rel (0) target = $region9
  $region8: #{global_discriminator_dot.5} parent=0 // pred_region
    _
  $region9: #{global_discriminator_dot.5} parent=0 // pred_fallthru
    _
  %s21 = sadd.s32 0, 0
  %s22 = smul.u32 16, %s21
  %p23 = scmp.lt.s32.totalorder %s22, 15
  %s24 = scalar_select %p23, %s22, 15
  %s25 = smul.addr %s24, 4
  %s26 = scalar_lea.vmem %s0, %s25
  %s27 = sadd.s32 0, 0
  %s28 = smul.u32 16, %s27
  %p29 = scmp.lt.s32.totalorder %s28, 15
  %s30 = scalar_select %p29, %s28, 15
  %s31 = smul.addr %s30, 4
  %s32 = smul.addr %s31, 4
  %s33 = scalar_lea.vmem %s2, %s32
  %s34 = sadd.s32 0, 0
  %s35 = smul.u32 16, %s34
  %p36 = scmp.lt.s32.totalorder %s35, 15
  %s37 = scalar_select %p36, %s35, 15
  %s38 = smul.addr %s37, 4
  %s39 = scalar_lea.vmem %s0, %s38
  %s40 = sadd.s32 0, 0
  %s41 = smul.u32 16, %s40
  %s42 = sadd.s32 0, 0
  %s43 = smul.u32 16, %s42
  %p44 = scmp.lt.s32.totalorder %s43, 15
  %s45 = scalar_select %p44, %s43, 15
  %s46 = smul.addr %s45, 4
  %s47 = smul.addr %s46, 4
  %s48 = scalar_lea.vmem %s2, %s47
  %s49 = sadd.s32 0, 0
  %s50 = smul.u32 16, %s49
  %v51 = vld [vmem:[%s39] sm:$0xf]
  %v52 = vld [vmem:[%s39 + $0x4] sm:$0xf]
  %v53 = vld [vmem:[%s39 + $0x8] sm:$0xf]
  %v54 = vld [vmem:[%s39 + $0xc] sm:$0xf]
  %v55 = vld [vmem:[%s39 + $0x10] sm:$0xf]
  %v56 = vld [vmem:[%s39 + $0x14] sm:$0xf]
  %v57 = vld [vmem:[%s39 + $0x18] sm:$0xf]
  %v58 = vld [vmem:[%s39 + $0x1c] sm:$0xf]
  %v59 = vld [vmem:[%s39 + $0x20] sm:$0xf]
  %v60 = vld [vmem:[%s39 + $0x24] sm:$0xf]
  %v61 = vld [vmem:[%s39 + $0x28] sm:$0xf]
  %v62 = vld [vmem:[%s39 + $0x2c] sm:$0xf]
  %v63 = vld [vmem:[%s39 + $0x30] sm:$0xf]
  %v64 = vld [vmem:[%s39 + $0x34] sm:$0xf]
  %v65 = vld [vmem:[%s39 + $0x38] sm:$0xf]
  %v66 = vld [vmem:[%s39 + $0x3c] sm:$0xf]
  %v67 = vld [vmem:[%s1] sm:$0xff]
  %v68 = vld [vmem:[%s1 + $0x8] sm:$0xff]
  %v69 = vld [vmem:[%s1 + $0x10] sm:$0xff]
  %v70 = vld [vmem:[%s1 + $0x18] sm:$0xff]
  %v71 = vld [vmem:[%s1 + $0x20] sm:$0xff]
  %v72 = vld [vmem:[%s1 + $0x28] sm:$0xff]
  %v73 = vld [vmem:[%s1 + $0x30] sm:$0xff]
  %v74 = vld [vmem:[%s1 + $0x38] sm:$0xff]
  %v75 = vld [vmem:[%s1 + $0x40] sm:$0xff]
  %v76 = vld [vmem:[%s1 + $0x48] sm:$0xff]
  %v77 = vld [vmem:[%s1 + $0x50] sm:$0xff]
  %v78 = vld [vmem:[%s1 + $0x58] sm:$0xff]
  %v79 = vld [vmem:[%s1 + $0x60] sm:$0xff]
  %v80 = vld [vmem:[%s1 + $0x68] sm:$0xff]
  %v81 = vld [vmem:[%s1 + $0x70] sm:$0xff]
  %v82 = vld [vmem:[%s1 + $0x78] sm:$0xff]
  %v83 = vld [vmem:[%s1 + $0x80] sm:$0xff]
  %v84 = vld [vmem:[%s1 + $0x88] sm:$0xff]
  %v85 = vld [vmem:[%s1 + $0x90] sm:$0xff]
  %v86 = vld [vmem:[%s1 + $0x98] sm:$0xff]
  %v87 = vld [vmem:[%s1 + $0xa0] sm:$0xff]
  %v88 = vld [vmem:[%s1 + $0xa8] sm:$0xff]
  %v89 = vld [vmem:[%s1 + $0xb0] sm:$0xff]
  %v90 = vld [vmem:[%s1 + $0xb8] sm:$0xff]
  %v91 = vld [vmem:[%s1 + $0xc0] sm:$0xff]
  %v92 = vld [vmem:[%s1 + $0xc8] sm:$0xff]
  %v93 = vld [vmem:[%s1 + $0xd0] sm:$0xff]
  %v94 = vld [vmem:[%s1 + $0xd8] sm:$0xff]
  %v95 = vld [vmem:[%s1 + $0xe0] sm:$0xff]
  %v96 = vld [vmem:[%s1 + $0xe8] sm:$0xff]
  %v97 = vld [vmem:[%s1 + $0xf0] sm:$0xff]
  %v98 = vld [vmem:[%s1 + $0xf8] sm:$0xff]
  %v115 = vunpack.c.l.b16 %v51
  %v116 = vunpack.c.l.b16 %v52
  %v117 = vunpack.c.l.b16 %v53
  %v118 = vunpack.c.l.b16 %v54
  %v119 = vunpack.c.l.b16 %v55
  %v120 = vunpack.c.l.b16 %v56
  %v121 = vunpack.c.l.b16 %v57
  %v122 = vunpack.c.l.b16 %v58
  %v123 = vunpack.c.l.b16 %v59
  %v124 = vunpack.c.l.b16 %v60
  %v125 = vunpack.c.l.b16 %v61
  %v126 = vunpack.c.l.b16 %v62
  %v127 = vunpack.c.l.b16 %v63
  %v128 = vunpack.c.l.b16 %v64
  %v129 = vunpack.c.l.b16 %v65
  %v130 = vunpack.c.l.b16 %v66
  %v131 = vpack.c.b16 %v116, %v115
  %v132 = vpack.c.b16 %v118, %v117
  %v133 = vpack.c.b16 %v120, %v119
  %v134 = vpack.c.b16 %v122, %v121
  %v135 = vpack.c.b16 %v124, %v123
  %v136 = vpack.c.b16 %v126, %v125
  %v137 = vpack.c.b16 %v128, %v127
  %v138 = vpack.c.b16 %v130, %v129
  %v179 = vunpack.c.l.b16 %v67
  %v180 = vunpack.c.h.b16 %v67
  %v181 = vunpack.c.l.b16 %v68
  %v182 = vunpack.c.h.b16 %v68
  %v183 = vunpack.c.l.b16 %v69
  %v184 = vunpack.c.h.b16 %v69
  %v185 = vunpack.c.l.b16 %v70
  %v186 = vunpack.c.h.b16 %v70
  %v187 = vunpack.c.l.b16 %v71
  %v188 = vunpack.c.h.b16 %v71
  %v189 = vunpack.c.l.b16 %v72
  %v190 = vunpack.c.h.b16 %v72
  %v191 = vunpack.c.l.b16 %v73
  %v192 = vunpack.c.h.b16 %v73
  %v193 = vunpack.c.l.b16 %v74
  %v194 = vunpack.c.h.b16 %v74
  %v195 = vunpack.c.l.b16 %v75
  %v196 = vunpack.c.h.b16 %v75
  %v197 = vunpack.c.l.b16 %v76
  %v198 = vunpack.c.h.b16 %v76
  %v199 = vunpack.c.l.b16 %v77
  %v200 = vunpack.c.h.b16 %v77
  %v201 = vunpack.c.l.b16 %v78
  %v202 = vunpack.c.h.b16 %v78
  %v203 = vunpack.c.l.b16 %v79
  %v204 = vunpack.c.h.b16 %v79
  %v205 = vunpack.c.l.b16 %v80
  %v206 = vunpack.c.h.b16 %v80
  %v207 = vunpack.c.l.b16 %v81
  %v208 = vunpack.c.h.b16 %v81
  %v209 = vunpack.c.l.b16 %v82
  %v210 = vunpack.c.h.b16 %v82
  %v211 = vunpack.c.l.b16 %v83
  %v212 = vunpack.c.h.b16 %v83
  %v213 = vunpack.c.l.b16 %v84
  %v214 = vunpack.c.h.b16 %v84
  %v215 = vunpack.c.l.b16 %v85
  %v216 = vunpack.c.h.b16 %v85
  %v217 = vunpack.c.l.b16 %v86
  %v218 = vunpack.c.h.b16 %v86
  %v219 = vunpack.c.l.b16 %v87
  %v220 = vunpack.c.h.b16 %v87
  %v221 = vunpack.c.l.b16 %v88
  %v222 = vunpack.c.h.b16 %v88
  %v223 = vunpack.c.l.b16 %v89
  %v224 = vunpack.c.h.b16 %v89
  %v225 = vunpack.c.l.b16 %v90
  %v226 = vunpack.c.h.b16 %v90
  %v227 = vunpack.c.l.b16 %v91
  %v228 = vunpack.c.h.b16 %v91
  %v229 = vunpack.c.l.b16 %v92
  %v230 = vunpack.c.h.b16 %v92
  %v231 = vunpack.c.l.b16 %v93
  %v232 = vunpack.c.h.b16 %v93
  %v233 = vunpack.c.l.b16 %v94
  %v234 = vunpack.c.h.b16 %v94
  %v235 = vunpack.c.l.b16 %v95
  %v236 = vunpack.c.h.b16 %v95
  %v237 = vunpack.c.l.b16 %v96
  %v238 = vunpack.c.h.b16 %v96
  %v239 = vunpack.c.l.b16 %v97
  %v240 = vunpack.c.h.b16 %v97
  %v241 = vunpack.c.l.b16 %v98
  %v242 = vunpack.c.h.b16 %v98
  %v243 = vpack.c.b16 %v183, %v179
  %v244 = vpack.c.b16 %v184, %v180
  %v245 = vpack.c.b16 %v185, %v181
  %v246 = vpack.c.b16 %v186, %v182
  %v247 = vpack.c.b16 %v191, %v187
  %v248 = vpack.c.b16 %v192, %v188
  %v249 = vpack.c.b16 %v193, %v189
  %v250 = vpack.c.b16 %v194, %v190
  %v251 = vpack.c.b16 %v199, %v195
  %v252 = vpack.c.b16 %v200, %v196
  %v253 = vpack.c.b16 %v201, %v197
  %v254 = vpack.c.b16 %v202, %v198
  %v255 = vpack.c.b16 %v207, %v203
  %v256 = vpack.c.b16 %v208, %v204
  %v257 = vpack.c.b16 %v209, %v205
  %v258 = vpack.c.b16 %v210, %v206
  %v259 = vpack.c.b16 %v215, %v211
  %v260 = vpack.c.b16 %v216, %v212
  %v261 = vpack.c.b16 %v217, %v213
  %v262 = vpack.c.b16 %v218, %v214
  %v263 = vpack.c.b16 %v223, %v219
  %v264 = vpack.c.b16 %v224, %v220
  %v265 = vpack.c.b16 %v225, %v221
  %v266 = vpack.c.b16 %v226, %v222
  %v267 = vpack.c.b16 %v231, %v227
  %v268 = vpack.c.b16 %v232, %v228
  %v269 = vpack.c.b16 %v233, %v229
  %v270 = vpack.c.b16 %v234, %v230
  %v271 = vpack.c.b16 %v239, %v235
  %v272 = vpack.c.b16 %v240, %v236
  %v273 = vpack.c.b16 %v241, %v237
  %v274 = vpack.c.b16 %v242, %v238
  %307 = vmatpush.bf16.msra.mxu0 %v271
  %308 = vmatpush.bf16.msra.mxu0 %v267
  %309 = vmatpush.bf16.msra.mxu0 %v263
  %310 = vmatpush.bf16.msra.mxu0 %v259
  %311 = vmatpush.bf16.msra.mxu0 %v255
  %312 = vmatpush.bf16.msra.mxu0 %v251
  %313 = vmatpush.bf16.msra.mxu0 %v247
  %314 = vmatpush.bf16.msra.mxu0 %v243
  %315 = vmatmul.bf16.gmra.mxu0 %v131
  %v316 = vpop.f32.mrf.mxu0
  %v317 = vadd.f32 0.0, %v316
  %v318 = vpop.f32.mrf.mxu0
  %v319 = vadd.f32 0.0, %v318
  %320 = vmatmul.bf16.gmra.mxu0 %v132
  %v321 = vpop.f32.mrf.mxu0
  %v322 = vadd.f32 0.0, %v321
  %v323 = vpop.f32.mrf.mxu0
  %v324 = vadd.f32 0.0, %v323
  %325 = vmatmul.bf16.gmra.mxu0 %v133
  %v326 = vpop.f32.mrf.mxu0
  %v327 = vadd.f32 0.0, %v326
  %v328 = vpop.f32.mrf.mxu0
  %v329 = vadd.f32 0.0, %v328
  %330 = vmatmul.bf16.gmra.mxu0 %v134
  %v331 = vpop.f32.mrf.mxu0
  %v332 = vadd.f32 0.0, %v331
  %v333 = vpop.f32.mrf.mxu0
  %v334 = vadd.f32 0.0, %v333
  %335 = vmatmul.bf16.gmra.mxu0 %v135
  %v336 = vpop.f32.mrf.mxu0
  %v337 = vadd.f32 0.0, %v336
  %v338 = vpop.f32.mrf.mxu0
  %v339 = vadd.f32 0.0, %v338
  %340 = vmatmul.bf16.gmra.mxu0 %v136
  %v341 = vpop.f32.mrf.mxu0
  %v342 = vadd.f32 0.0, %v341
  %v343 = vpop.f32.mrf.mxu0
  %v344 = vadd.f32 0.0, %v343
  %345 = vmatmul.bf16.gmra.mxu0 %v137
  %v346 = vpop.f32.mrf.mxu0
  %v347 = vadd.f32 0.0, %v346
  %v348 = vpop.f32.mrf.mxu0
  %v349 = vadd.f32 0.0, %v348
  %350 = vmatmul.bf16.gmra.mxu0 %v138
  %v351 = vpop.f32.mrf.mxu0
  %v352 = vadd.f32 0.0, %v351
  %v353 = vpop.f32.mrf.mxu0
  %v354 = vadd.f32 0.0, %v353
  %355 = vdwg.mxu0
  %356 = vmatpush.bf16.msra.mxu0 %v272
  %357 = vmatpush.bf16.msra.mxu0 %v268
  %358 = vmatpush.bf16.msra.mxu0 %v264
  %359 = vmatpush.bf16.msra.mxu0 %v260
  %360 = vmatpush.bf16.msra.mxu0 %v256
  %361 = vmatpush.bf16.msra.mxu0 %v252
  %362 = vmatpush.bf16.msra.mxu0 %v248
  %363 = vmatpush.bf16.msra.mxu0 %v244
  %364 = vmatmul.bf16.gmra.mxu0 %v131
  %v365 = vpop.f32.mrf.mxu0
  %v366 = vadd.f32 0.0, %v365
  %v367 = vpop.f32.mrf.mxu0
  %v368 = vadd.f32 0.0, %v367
  %369 = vmatmul.bf16.gmra.mxu0 %v132
  %v370 = vpop.f32.mrf.mxu0
  %v371 = vadd.f32 0.0, %v370
  %v372 = vpop.f32.mrf.mxu0
  %v373 = vadd.f32 0.0, %v372
  %374 = vmatmul.bf16.gmra.mxu0 %v133
  %v375 = vpop.f32.mrf.mxu0
  %v376 = vadd.f32 0.0, %v375
  %v377 = vpop.f32.mrf.mxu0
  %v378 = vadd.f32 0.0, %v377
  %379 = vmatmul.bf16.gmra.mxu0 %v134
  %v380 = vpop.f32.mrf.mxu0
  %v381 = vadd.f32 0.0, %v380
  %v382 = vpop.f32.mrf.mxu0
  %v383 = vadd.f32 0.0, %v382
  %384 = vmatmul.bf16.gmra.mxu0 %v135
  %v385 = vpop.f32.mrf.mxu0
  %v386 = vadd.f32 0.0, %v385
  %v387 = vpop.f32.mrf.mxu0
  %v388 = vadd.f32 0.0, %v387
  %389 = vmatmul.bf16.gmra.mxu0 %v136
  %v390 = vpop.f32.mrf.mxu0
  %v391 = vadd.f32 0.0, %v390
  %v392 = vpop.f32.mrf.mxu0
  %v393 = vadd.f32 0.0, %v392
  %394 = vmatmul.bf16.gmra.mxu0 %v137
  %v395 = vpop.f32.mrf.mxu0
  %v396 = vadd.f32 0.0, %v395
  %v397 = vpop.f32.mrf.mxu0
  %v398 = vadd.f32 0.0, %v397
  %399 = vmatmul.bf16.gmra.mxu0 %v138
  %v400 = vpop.f32.mrf.mxu0
  %v401 = vadd.f32 0.0, %v400
  %v402 = vpop.f32.mrf.mxu0
  %v403 = vadd.f32 0.0, %v402
  %404 = vdwg.mxu0
  %405 = vmatpush.bf16.msra.mxu0 %v273
  %406 = vmatpush.bf16.msra.mxu0 %v269
  %407 = vmatpush.bf16.msra.mxu0 %v265
  %408 = vmatpush.bf16.msra.mxu0 %v261
  %409 = vmatpush.bf16.msra.mxu0 %v257
  %410 = vmatpush.bf16.msra.mxu0 %v253
  %411 = vmatpush.bf16.msra.mxu0 %v249
  %412 = vmatpush.bf16.msra.mxu0 %v245
  %413 = vmatmul.bf16.gmra.mxu0 %v131
  %v414 = vpop.f32.mrf.mxu0
  %v415 = vadd.f32 0.0, %v414
  %v416 = vpop.f32.mrf.mxu0
  %v417 = vadd.f32 0.0, %v416
  %418 = vmatmul.bf16.gmra.mxu0 %v132
  %v419 = vpop.f32.mrf.mxu0
  %v420 = vadd.f32 0.0, %v419
  %v421 = vpop.f32.mrf.mxu0
  %v422 = vadd.f32 0.0, %v421
  %423 = vmatmul.bf16.gmra.mxu0 %v133
  %v424 = vpop.f32.mrf.mxu0
  %v425 = vadd.f32 0.0, %v424
  %v426 = vpop.f32.mrf.mxu0
  %v427 = vadd.f32 0.0, %v426
  %428 = vmatmul.bf16.gmra.mxu0 %v134
  %v429 = vpop.f32.mrf.mxu0
  %v430 = vadd.f32 0.0, %v429
  %v431 = vpop.f32.mrf.mxu0
  %v432 = vadd.f32 0.0, %v431
  %433 = vmatmul.bf16.gmra.mxu0 %v135
  %v434 = vpop.f32.mrf.mxu0
  %v435 = vadd.f32 0.0, %v434
  %v436 = vpop.f32.mrf.mxu0
  %v437 = vadd.f32 0.0, %v436
  %438 = vmatmul.bf16.gmra.mxu0 %v136
  %v439 = vpop.f32.mrf.mxu0
  %v440 = vadd.f32 0.0, %v439
  %v441 = vpop.f32.mrf.mxu0
  %v442 = vadd.f32 0.0, %v441
  %443 = vmatmul.bf16.gmra.mxu0 %v137
  %v444 = vpop.f32.mrf.mxu0
  %v445 = vadd.f32 0.0, %v444
  %v446 = vpop.f32.mrf.mxu0
  %v447 = vadd.f32 0.0, %v446
  %448 = vmatmul.bf16.gmra.mxu0 %v138
  %v449 = vpop.f32.mrf.mxu0
  %v450 = vadd.f32 0.0, %v449
  %v451 = vpop.f32.mrf.mxu0
  %v452 = vadd.f32 0.0, %v451
  %453 = vdwg.mxu0
  %454 = vmatpush.bf16.msra.mxu0 %v274
  %455 = vmatpush.bf16.msra.mxu0 %v270
  %456 = vmatpush.bf16.msra.mxu0 %v266
  %457 = vmatpush.bf16.msra.mxu0 %v262
  %458 = vmatpush.bf16.msra.mxu0 %v258
  %459 = vmatpush.bf16.msra.mxu0 %v254
  %460 = vmatpush.bf16.msra.mxu0 %v250
  %461 = vmatpush.bf16.msra.mxu0 %v246
  %462 = vmatmul.bf16.gmra.mxu0 %v131
  %v463 = vpop.f32.mrf.mxu0
  %v464 = vadd.f32 0.0, %v463
  %v465 = vpop.f32.mrf.mxu0
  %v466 = vadd.f32 0.0, %v465
  %467 = vmatmul.bf16.gmra.mxu0 %v132
  %v468 = vpop.f32.mrf.mxu0
  %v469 = vadd.f32 0.0, %v468
  %v470 = vpop.f32.mrf.mxu0
  %v471 = vadd.f32 0.0, %v470
  %472 = vmatmul.bf16.gmra.mxu0 %v133
  %v473 = vpop.f32.mrf.mxu0
  %v474 = vadd.f32 0.0, %v473
  %v475 = vpop.f32.mrf.mxu0
  %v476 = vadd.f32 0.0, %v475
  %477 = vmatmul.bf16.gmra.mxu0 %v134
  %v478 = vpop.f32.mrf.mxu0
  %v479 = vadd.f32 0.0, %v478
  %v480 = vpop.f32.mrf.mxu0
  %v481 = vadd.f32 0.0, %v480
  %482 = vmatmul.bf16.gmra.mxu0 %v135
  %v483 = vpop.f32.mrf.mxu0
  %v484 = vadd.f32 0.0, %v483
  %v485 = vpop.f32.mrf.mxu0
  %v486 = vadd.f32 0.0, %v485
  %487 = vmatmul.bf16.gmra.mxu0 %v136
  %v488 = vpop.f32.mrf.mxu0
  %v489 = vadd.f32 0.0, %v488
  %v490 = vpop.f32.mrf.mxu0
  %v491 = vadd.f32 0.0, %v490
  %492 = vmatmul.bf16.gmra.mxu0 %v137
  %v493 = vpop.f32.mrf.mxu0
  %v494 = vadd.f32 0.0, %v493
  %v495 = vpop.f32.mrf.mxu0
  %v496 = vadd.f32 0.0, %v495
  %497 = vmatmul.bf16.gmra.mxu0 %v138
  %v498 = vpop.f32.mrf.mxu0
  %v499 = vadd.f32 0.0, %v498
  %v500 = vpop.f32.mrf.mxu0
  %v501 = vadd.f32 0.0, %v500
  %502 = vdwg.mxu0
  %v503 = vpack.c.bf16 %v366, %v317
  %v504 = vpack.c.bf16 %v464, %v415
  %v505 = vpack.c.bf16 %v368, %v319
  %v506 = vpack.c.bf16 %v466, %v417
  %v507 = vpack.c.bf16 %v371, %v322
  %v508 = vpack.c.bf16 %v469, %v420
  %v509 = vpack.c.bf16 %v373, %v324
  %v510 = vpack.c.bf16 %v471, %v422
  %v511 = vpack.c.bf16 %v376, %v327
  %v512 = vpack.c.bf16 %v474, %v425
  %v513 = vpack.c.bf16 %v378, %v329
  %v514 = vpack.c.bf16 %v476, %v427
  %v515 = vpack.c.bf16 %v381, %v332
  %v516 = vpack.c.bf16 %v479, %v430
  %v517 = vpack.c.bf16 %v383, %v334
  %v518 = vpack.c.bf16 %v481, %v432
  %v519 = vpack.c.bf16 %v386, %v337
  %v520 = vpack.c.bf16 %v484, %v435
  %v521 = vpack.c.bf16 %v388, %v339
  %v522 = vpack.c.bf16 %v486, %v437
  %v523 = vpack.c.bf16 %v391, %v342
  %v524 = vpack.c.bf16 %v489, %v440
  %v525 = vpack.c.bf16 %v393, %v344
  %v526 = vpack.c.bf16 %v491, %v442
  %v527 = vpack.c.bf16 %v396, %v347
  %v528 = vpack.c.bf16 %v494, %v445
  %v529 = vpack.c.bf16 %v398, %v349
  %v530 = vpack.c.bf16 %v496, %v447
  %v531 = vpack.c.bf16 %v401, %v352
  %v532 = vpack.c.bf16 %v499, %v450
  %v533 = vpack.c.bf16 %v403, %v354
  %v534 = vpack.c.bf16 %v501, %v452
  %535 = vst [vmem:[%s48] sm:$0xff] %v503
  %536 = vst [vmem:[%s48 + $0x8] sm:$0xff] %v504
  %537 = vst [vmem:[%s48 + $0x10] sm:$0xff] %v505
  %538 = vst [vmem:[%s48 + $0x18] sm:$0xff] %v506
  %539 = vst [vmem:[%s48 + $0x20] sm:$0xff] %v507
  %540 = vst [vmem:[%s48 + $0x28] sm:$0xff] %v508
  %541 = vst [vmem:[%s48 + $0x30] sm:$0xff] %v509
  %542 = vst [vmem:[%s48 + $0x38] sm:$0xff] %v510
  %543 = vst [vmem:[%s48 + $0x40] sm:$0xff] %v511
  %544 = vst [vmem:[%s48 + $0x48] sm:$0xff] %v512
  %545 = vst [vmem:[%s48 + $0x50] sm:$0xff] %v513
  %546 = vst [vmem:[%s48 + $0x58] sm:$0xff] %v514
  %547 = vst [vmem:[%s48 + $0x60] sm:$0xff] %v515
  %548 = vst [vmem:[%s48 + $0x68] sm:$0xff] %v516
  %549 = vst [vmem:[%s48 + $0x70] sm:$0xff] %v517
  %550 = vst [vmem:[%s48 + $0x78] sm:$0xff] %v518
  %551 = vst [vmem:[%s48 + $0x80] sm:$0xff] %v519
  %552 = vst [vmem:[%s48 + $0x88] sm:$0xff] %v520
  %553 = vst [vmem:[%s48 + $0x90] sm:$0xff] %v521
  %554 = vst [vmem:[%s48 + $0x98] sm:$0xff] %v522
  %555 = vst [vmem:[%s48 + $0xa0] sm:$0xff] %v523
  %556 = vst [vmem:[%s48 + $0xa8] sm:$0xff] %v524
  %557 = vst [vmem:[%s48 + $0xb0] sm:$0xff] %v525
  %558 = vst [vmem:[%s48 + $0xb8] sm:$0xff] %v526
  %559 = vst [vmem:[%s48 + $0xc0] sm:$0xff] %v527
  %560 = vst [vmem:[%s48 + $0xc8] sm:$0xff] %v528
  %561 = vst [vmem:[%s48 + $0xd0] sm:$0xff] %v529
  %562 = vst [vmem:[%s48 + $0xd8] sm:$0xff] %v530
  %563 = vst [vmem:[%s48 + $0xe0] sm:$0xff] %v531
  %564 = vst [vmem:[%s48 + $0xe8] sm:$0xff] %v532
  %565 = vst [vmem:[%s48 + $0xf0] sm:$0xff] %v533
  %566 = vst [vmem:[%s48 + $0xf8] sm:$0xff] %v534
  %p567 = scmp.eq.s32.totalorder 0, 0
  // Predicated region
  $region10: #{global_discriminator_dot.5} parent=0 // pred_check
    %p568 = pneg %p567
  $region11: #{global_discriminator_dot.5} parent=0 // pred_check_branch
    %570 = sbr.rel (%p568) target = $region13
  $region12: #{global_discriminator_dot.5} parent=0 // pred_region
    %571 = vst [vmem:[#allocation2] sm:$0xff] 0.0
    %572 = vst [vmem:[#allocation2 + $0x8] sm:$0xff] 0.0
  $region13: #{global_discriminator_dot.5} parent=0 // pred_fallthru
    _
  %v573 = vld [vmem:[#allocation2] ss:$8 sm:$0x3]
  %v574 = vadd.f32 %v317, %v319
  %v575 = vadd.f32 %v574, %v322
  %v576 = vadd.f32 %v575, %v324
  %v577 = vadd.f32 %v576, %v327
  %v578 = vadd.f32 %v577, %v329
  %v579 = vadd.f32 %v578, %v332
  %v580 = vadd.f32 %v579, %v334
  %v581 = vadd.f32 %v580, %v337
  %v582 = vadd.f32 %v581, %v339
  %v583 = vadd.f32 %v582, %v342
  %v584 = vadd.f32 %v583, %v344
  %v585 = vadd.f32 %v584, %v347
  %v586 = vadd.f32 %v585, %v349
  %v587 = vadd.f32 %v586, %v352
  %v588 = vadd.f32 %v587, %v354
  %v589 = vrot.slane %v588, 4
  %v590 = vadd.f32 %v588, %v589
  %v591 = vrot.slane %v590, 2
  %v592 = vadd.f32 %v590, %v591
  %v593 = vrot.slane %v592, 1
  %v594 = vadd.f32 %v592, %v593
  %v595 = vadd.f32 %v366, %v368
  %v596 = vadd.f32 %v595, %v371
  %v597 = vadd.f32 %v596, %v373
  %v598 = vadd.f32 %v597, %v376
  %v599 = vadd.f32 %v598, %v378
  %v600 = vadd.f32 %v599, %v381
  %v601 = vadd.f32 %v600, %v383
  %v602 = vadd.f32 %v601, %v386
  %v603 = vadd.f32 %v602, %v388
  %v604 = vadd.f32 %v603, %v391
  %v605 = vadd.f32 %v604, %v393
  %v606 = vadd.f32 %v605, %v396
  %v607 = vadd.f32 %v606, %v398
  %v608 = vadd.f32 %v607, %v401
  %v609 = vadd.f32 %v608, %v403
  %v610 = vrot.slane %v609, 4
  %v611 = vadd.f32 %v609, %v610
  %v612 = vrot.slane %v611, 2
  %v613 = vadd.f32 %v611, %v612
  %v614 = vrot.slane %v613, 1
  %v615 = vadd.f32 %v613, %v614
  %v618 = vrot.slane %v615, 7
  %vm619 = vcmask 1040384
  %v620 = vsel %vm619, %v594, %v618
  %v622 = vadd.f32 %v573, %v620
  %v623 = vlaneseq
  %vm624 = vcmp.ge.s32.totalorder %v623, 0
  %vm625 = vcmp.lt.s32.totalorder %v623, 256
  %vm626 = vmand %vm624, %vm625
  %627 = vst.msk [vmem:[#allocation2] ss:$8 sm:$0x3] %vm626, %v622
  %628 = vst.msk [vmem:[#allocation2] ss:$8 sm:$0x0] %vm626, %v622
  %s629 = scalar_lea.vmem [#allocation2], 1
  %v630 = vld [vmem:[%s629] ss:$8 sm:$0x3]
  %v631 = vmul.f32 %v317, %v317
  %v632 = vmul.f32 %v366, %v366
  %v633 = vmul.f32 %v319, %v319
  %v634 = vmul.f32 %v368, %v368
  %v635 = vmul.f32 %v322, %v322
  %v636 = vmul.f32 %v371, %v371
  %v637 = vmul.f32 %v324, %v324
  %v638 = vmul.f32 %v373, %v373
  %v639 = vmul.f32 %v327, %v327
  %v640 = vmul.f32 %v376, %v376
  %v641 = vmul.f32 %v329, %v329
  %v642 = vmul.f32 %v378, %v378
  %v643 = vmul.f32 %v332, %v332
  %v644 = vmul.f32 %v381, %v381
  %v645 = vmul.f32 %v334, %v334
  %v646 = vmul.f32 %v383, %v383
  %v647 = vmul.f32 %v337, %v337
  %v648 = vmul.f32 %v386, %v386
  %v649 = vmul.f32 %v339, %v339
  %v650 = vmul.f32 %v388, %v388
  %v651 = vmul.f32 %v342, %v342
  %v652 = vmul.f32 %v391, %v391
  %v653 = vmul.f32 %v344, %v344
  %v654 = vmul.f32 %v393, %v393
  %v655 = vmul.f32 %v347, %v347
  %v656 = vmul.f32 %v396, %v396
  %v657 = vmul.f32 %v349, %v349
  %v658 = vmul.f32 %v398, %v398
  %v659 = vmul.f32 %v352, %v352
  %v660 = vmul.f32 %v401, %v401
  %v661 = vmul.f32 %v354, %v354
  %v662 = vmul.f32 %v403, %v403
  %v663 = vadd.f32 %v631, %v633
  %v664 = vadd.f32 %v663, %v635
  %v665 = vadd.f32 %v664, %v637
  %v666 = vadd.f32 %v665, %v639
  %v667 = vadd.f32 %v666, %v641
  %v668 = vadd.f32 %v667, %v643
  %v669 = vadd.f32 %v668, %v645
  %v670 = vadd.f32 %v669, %v647
  %v671 = vadd.f32 %v670, %v649
  %v672 = vadd.f32 %v671, %v651
  %v673 = vadd.f32 %v672, %v653
  %v674 = vadd.f32 %v673, %v655
  %v675 = vadd.f32 %v674, %v657
  %v676 = vadd.f32 %v675, %v659
  %v677 = vadd.f32 %v676, %v661
  %v678 = vrot.slane %v677, 4
  %v679 = vadd.f32 %v677, %v678
  %v680 = vrot.slane %v679, 2
  %v681 = vadd.f32 %v679, %v680
  %v682 = vrot.slane %v681, 1
  %v683 = vadd.f32 %v681, %v682
  %v684 = vadd.f32 %v632, %v634
  %v685 = vadd.f32 %v684, %v636
  %v686 = vadd.f32 %v685, %v638
  %v687 = vadd.f32 %v686, %v640
  %v688 = vadd.f32 %v687, %v642
  %v689 = vadd.f32 %v688, %v644
  %v690 = vadd.f32 %v689, %v646
  %v691 = vadd.f32 %v690, %v648
  %v692 = vadd.f32 %v691, %v650
  %v693 = vadd.f32 %v692, %v652
  %v694 = vadd.f32 %v693, %v654
  %v695 = vadd.f32 %v694, %v656
  %v696 = vadd.f32 %v695, %v658
  %v697 = vadd.f32 %v696, %v660
  %v698 = vadd.f32 %v697, %v662
  %v699 = vrot.slane %v698, 4
  %v700 = vadd.f32 %v698, %v699
  %v701 = vrot.slane %v700, 2
  %v702 = vadd.f32 %v700, %v701
  %v703 = vrot.slane %v702, 1
  %v704 = vadd.f32 %v702, %v703
  %v707 = vrot.slane %v704, 7
  %v708 = vsel %vm619, %v683, %v707
  %v710 = vadd.f32 %v630, %v708
  %711 = vst.msk [vmem:[%s629] ss:$8 sm:$0x3] %vm626, %v710
  %712 = vst.msk [vmem:[%s629] ss:$8 sm:$0x0] %vm626, %v710
  // Predicated region
  $region14: #{global_discriminator_dot.5} parent=0 // pred_check
    %p713 = pneg %p567
  $region15: #{global_discriminator_dot.5} parent=0 // pred_check_branch
    %715 = sbr.rel (%p713) target = $region17
  $region16: #{global_discriminator_dot.5} parent=0 // pred_region
    %v716 = vld [vmem:[#allocation2] sm:$0xff]
    %v717 = vld [vmem:[#allocation2 + $0x8] sm:$0xff]
    %718 = vst [vmem:[%s3] sm:$0xff] %v716
    %719 = vst [vmem:[%s3 + $0x8] sm:$0xff] %v717
  $region17: #{global_discriminator_dot.5} parent=0 // pred_fallthru
    _
  %s720 = sadd.s32 0, 0
  %s721 = smul.u32 16, %s720
  %p722 = scmp.lt.s32.totalorder %s721, 15
  %s723 = scalar_select %p722, %s721, 15
  %s724 = smul.addr %s723, 4
  %s725 = smul.addr %s724, 4
  %s726 = scalar_lea.vmem %s2, %s725
  // Predicated region
  $region18: #{global_discriminator_dot.5} parent=0 // pred_check
    _
  $region19: #{global_discriminator_dot.5} parent=0 // pred_check_branch
    %728 = sbr.rel (0) target = $region21
  $region20: #{global_discriminator_dot.5} parent=0 // pred_region
    %s729 = sadd.s32 0, 0
    %s730 = smul.u32 16, %s729
  $region21: #{global_discriminator_dot.5} parent=0 // pred_fallthru
    _
  // Predicated region
  $region22: #{global_discriminator_dot.5} parent=0 // pred_check
    _
  $region23: #{global_discriminator_dot.5} parent=0 // pred_check_branch
    %732 = sbr.rel (0) target = $region25
  $region24: #{global_discriminator_dot.5} parent=0 // pred_region
    _
  $region25: #{global_discriminator_dot.5} parent=0 // pred_fallthru
    _
  // Predicated region
  $region26: #{global_discriminator_dot.5} parent=0 // pred_check
    _
  $region27: #{global_discriminator_dot.5} parent=0 // pred_check_branch
    %734 = sbr.rel (0) target = $region29
  $region28: #{global_discriminator_dot.5} parent=0 // pred_region
    %s735 = sadd.s32 0, 0
    %s736 = smul.u32 16, %s735
    %p737 = scmp.lt.s32.totalorder %s736, 15
    %s738 = scalar_select %p737, %s736, 15
    %s739 = smul.addr %s738, 4
    %s740 = smul.addr %s739, 4
    %s741 = scalar_lea.vmem %s2, %s740
  $region29: #{global_discriminator_dot.5} parent=0 // pred_fallthru
    _
  // Predicated region
  $region30: #{global_discriminator_dot.5} parent=0 // pred_check
    _
  $region31: #{global_discriminator_dot.5} parent=0 // pred_check_branch
    %743 = sbr.rel (0) target = $region33
  $region32: #{global_discriminator_dot.5} parent=0 // pred_region
    _
  $region33: #{global_discriminator_dot.5} parent=0 // pred_fallthru
    _

// kernel: global_discriminator_dot.9
$region0: #{global_discriminator_dot.9}
  #allocation0 [shape = 'u32[]', space=smem, size = 0x4, offset = 0x4, fixed_abs, tag = 'smem constant byte address 0x4 - core index']
  #allocation1 [shape = 'u32[72,128]{1,0:T(1,128)}', space=vmem, size = 0x9000, scoped, tag = 'internal scratch']
  %s0 = inlined_call_operand.vmem [shape: bf16[128,256], index: 0, kind: input, shape index: {}]
  %s1 = inlined_call_operand.vmem [shape: bf16[128,256], index: 1, kind: input, shape index: {}]
  %s2 = inlined_call_operand.vmem [shape: f32[128,128], index: 2, kind: output, shape index: {}]
  %s3 = sld [smem:[#allocation0]]
  $region18: #{global_discriminator_dot.9} parent=0
    _
  %s5 = ssub.s32 1, %s3
  %s6 = scalar_select 0, %s5, %s3
  // Predicated region
  $region2: #{global_discriminator_dot.9} parent=0 // pred_check
    _
  $region3: #{global_discriminator_dot.9} parent=0 // pred_check_branch
    %8 = sbr.rel (0) target = $region5
  $region4: #{global_discriminator_dot.9} parent=0 // pred_region
    _
  $region5: #{global_discriminator_dot.9} parent=0 // pred_fallthru
    _
  // Predicated region
  $region6: #{global_discriminator_dot.9} parent=0 // pred_check
    _
  $region7: #{global_discriminator_dot.9} parent=0 // pred_check_branch
    %10 = sbr.rel (0) target = $region9
  $region8: #{global_discriminator_dot.9} parent=0 // pred_region
    _
  $region9: #{global_discriminator_dot.9} parent=0 // pred_fallthru
    _
  %v11 = vld [vmem:[%s0] sm:$0xff]
  %v12 = vld [vmem:[%s0 + $0x8] sm:$0xff]
  %v13 = vld [vmem:[%s0 + $0x10] sm:$0xff]
  %v14 = vld [vmem:[%s0 + $0x18] sm:$0xff]
  %v15 = vld [vmem:[%s0 + $0x20] sm:$0xff]
  %v16 = vld [vmem:[%s0 + $0x28] sm:$0xff]
  %v17 = vld [vmem:[%s0 + $0x30] sm:$0xff]
  %v18 = vld [vmem:[%s0 + $0x38] sm:$0xff]
  %v19 = vld [vmem:[%s0 + $0x40] sm:$0xff]
  %v20 = vld [vmem:[%s0 + $0x48] sm:$0xff]
  %v21 = vld [vmem:[%s0 + $0x50] sm:$0xff]
  %v22 = vld [vmem:[%s0 + $0x58] sm:$0xff]
  %v23 = vld [vmem:[%s0 + $0x60] sm:$0xff]
  %v24 = vld [vmem:[%s0 + $0x68] sm:$0xff]
  %v25 = vld [vmem:[%s0 + $0x70] sm:$0xff]
  %v26 = vld [vmem:[%s0 + $0x78] sm:$0xff]
  %v27 = vld [vmem:[%s1] sm:$0xff]
  %v28 = vld [vmem:[%s1 + $0x8] sm:$0xff]
  %v29 = vld [vmem:[%s1 + $0x10] sm:$0xff]
  %v30 = vld [vmem:[%s1 + $0x18] sm:$0xff]
  %v31 = vld [vmem:[%s1 + $0x20] sm:$0xff]
  %v32 = vld [vmem:[%s1 + $0x28] sm:$0xff]
  %v33 = vld [vmem:[%s1 + $0x30] sm:$0xff]
  %v34 = vld [vmem:[%s1 + $0x38] sm:$0xff]
  %v35 = vld [vmem:[%s1 + $0x40] sm:$0xff]
  %v36 = vld [vmem:[%s1 + $0x48] sm:$0xff]
  %v37 = vld [vmem:[%s1 + $0x50] sm:$0xff]
  %v38 = vld [vmem:[%s1 + $0x58] sm:$0xff]
  %v39 = vld [vmem:[%s1 + $0x60] sm:$0xff]
  %v40 = vld [vmem:[%s1 + $0x68] sm:$0xff]
  %v41 = vld [vmem:[%s1 + $0x70] sm:$0xff]
  %v42 = vld [vmem:[%s1 + $0x78] sm:$0xff]
  %v59 = vunpack.c.l.b16 %v11
  %v60 = vunpack.c.h.b16 %v11
  %v61 = vunpack.c.l.b16 %v12
  %v62 = vunpack.c.h.b16 %v12
  %v63 = vunpack.c.l.b16 %v13
  %v64 = vunpack.c.h.b16 %v13
  %v65 = vunpack.c.l.b16 %v14
  %v66 = vunpack.c.h.b16 %v14
  %v67 = vunpack.c.l.b16 %v15
  %v68 = vunpack.c.h.b16 %v15
  %v69 = vunpack.c.l.b16 %v16
  %v70 = vunpack.c.h.b16 %v16
  %v71 = vunpack.c.l.b16 %v17
  %v72 = vunpack.c.h.b16 %v17
  %v73 = vunpack.c.l.b16 %v18
  %v74 = vunpack.c.h.b16 %v18
  %v75 = vunpack.c.l.b16 %v19
  %v76 = vunpack.c.h.b16 %v19
  %v77 = vunpack.c.l.b16 %v20
  %v78 = vunpack.c.h.b16 %v20
  %v79 = vunpack.c.l.b16 %v21
  %v80 = vunpack.c.h.b16 %v21
  %v81 = vunpack.c.l.b16 %v22
  %v82 = vunpack.c.h.b16 %v22
  %v83 = vunpack.c.l.b16 %v23
  %v84 = vunpack.c.h.b16 %v23
  %v85 = vunpack.c.l.b16 %v24
  %v86 = vunpack.c.h.b16 %v24
  %v87 = vunpack.c.l.b16 %v25
  %v88 = vunpack.c.h.b16 %v25
  %v89 = vunpack.c.l.b16 %v26
  %v90 = vunpack.c.h.b16 %v26
  %v91 = vpack.c.b16 %v61, %v59
  %v92 = vpack.c.b16 %v62, %v60
  %v93 = vpack.c.b16 %v65, %v63
  %v94 = vpack.c.b16 %v66, %v64
  %v95 = vpack.c.b16 %v69, %v67
  %v96 = vpack.c.b16 %v70, %v68
  %v97 = vpack.c.b16 %v73, %v71
  %v98 = vpack.c.b16 %v74, %v72
  %v99 = vpack.c.b16 %v77, %v75
  %v100 = vpack.c.b16 %v78, %v76
  %v101 = vpack.c.b16 %v81, %v79
  %v102 = vpack.c.b16 %v82, %v80
  %v103 = vpack.c.b16 %v85, %v83
  %v104 = vpack.c.b16 %v86, %v84
  %v105 = vpack.c.b16 %v89, %v87
  %v106 = vpack.c.b16 %v90, %v88
  %v139 = vunpack.c.l.b16 %v27
  %v140 = vunpack.c.h.b16 %v27
  %v141 = vunpack.c.l.b16 %v28
  %v142 = vunpack.c.h.b16 %v28
  %v143 = vunpack.c.l.b16 %v29
  %v144 = vunpack.c.h.b16 %v29
  %v145 = vunpack.c.l.b16 %v30
  %v146 = vunpack.c.h.b16 %v30
  %v147 = vunpack.c.l.b16 %v31
  %v148 = vunpack.c.h.b16 %v31
  %v149 = vunpack.c.l.b16 %v32
  %v150 = vunpack.c.h.b16 %v32
  %v151 = vunpack.c.l.b16 %v33
  %v152 = vunpack.c.h.b16 %v33
  %v153 = vunpack.c.l.b16 %v34
  %v154 = vunpack.c.h.b16 %v34
  %v155 = vunpack.c.l.b16 %v35
  %v156 = vunpack.c.h.b16 %v35
  %v157 = vunpack.c.l.b16 %v36
  %v158 = vunpack.c.h.b16 %v36
  %v159 = vunpack.c.l.b16 %v37
  %v160 = vunpack.c.h.b16 %v37
  %v161 = vunpack.c.l.b16 %v38
  %v162 = vunpack.c.h.b16 %v38
  %v163 = vunpack.c.l.b16 %v39
  %v164 = vunpack.c.h.b16 %v39
  %v165 = vunpack.c.l.b16 %v40
  %v166 = vunpack.c.h.b16 %v40
  %v167 = vunpack.c.l.b16 %v41
  %v168 = vunpack.c.h.b16 %v41
  %v169 = vunpack.c.l.b16 %v42
  %v170 = vunpack.c.h.b16 %v42
  %v171 = vpack.c.b16 %v141, %v139
  %v172 = vpack.c.b16 %v142, %v140
  %v173 = vpack.c.b16 %v145, %v143
  %v174 = vpack.c.b16 %v146, %v144
  %v175 = vpack.c.b16 %v149, %v147
  %v176 = vpack.c.b16 %v150, %v148
  %v177 = vpack.c.b16 %v153, %v151
  %v178 = vpack.c.b16 %v154, %v152
  %v179 = vpack.c.b16 %v157, %v155
  %v180 = vpack.c.b16 %v158, %v156
  %v181 = vpack.c.b16 %v161, %v159
  %v182 = vpack.c.b16 %v162, %v160
  %v183 = vpack.c.b16 %v165, %v163
  %v184 = vpack.c.b16 %v166, %v164
  %v185 = vpack.c.b16 %v169, %v167
  %v186 = vpack.c.b16 %v170, %v168
  %203 = vmatpush.bf16.xpose.msra.mxu0 %v185
  %204 = vmatpush.bf16.xpose.msra.mxu0 %v183
  %205 = vmatpush.bf16.xpose.msra.mxu0 %v181
  %206 = vmatpush.bf16.xpose.msra.mxu0 %v179
  %207 = vmatpush.bf16.xpose.msra.mxu0 %v177
  %208 = vmatpush.bf16.xpose.msra.mxu0 %v175
  %209 = vmatpush.bf16.xpose.msra.mxu0 %v173
  %210 = vmatpush.bf16.xpose.msra.mxu0 %v171
  %211 = vmatmul.bf16.gmra.mxu0 %v91
  %v212 = vpop.f32.mrf.mxu0
  %v213 = vadd.f32 0.0, %v212
  %v214 = vpop.f32.mrf.mxu0
  %v215 = vadd.f32 0.0, %v214
  %216 = vmatmul.bf16.gmra.mxu0 %v93
  %v217 = vpop.f32.mrf.mxu0
  %v218 = vadd.f32 0.0, %v217
  %v219 = vpop.f32.mrf.mxu0
  %v220 = vadd.f32 0.0, %v219
  %221 = vmatmul.bf16.gmra.mxu0 %v95
  %v222 = vpop.f32.mrf.mxu0
  %v223 = vadd.f32 0.0, %v222
  %v224 = vpop.f32.mrf.mxu0
  %v225 = vadd.f32 0.0, %v224
  %226 = vmatmul.bf16.gmra.mxu0 %v97
  %v227 = vpop.f32.mrf.mxu0
  %v228 = vadd.f32 0.0, %v227
  %v229 = vpop.f32.mrf.mxu0
  %v230 = vadd.f32 0.0, %v229
  %231 = vmatmul.bf16.gmra.mxu0 %v99
  %v232 = vpop.f32.mrf.mxu0
  %v233 = vadd.f32 0.0, %v232
  %v234 = vpop.f32.mrf.mxu0
  %v235 = vadd.f32 0.0, %v234
  %236 = vmatmul.bf16.gmra.mxu0 %v101
  %v237 = vpop.f32.mrf.mxu0
  %v238 = vadd.f32 0.0, %v237
  %v239 = vpop.f32.mrf.mxu0
  %v240 = vadd.f32 0.0, %v239
  %241 = vmatmul.bf16.gmra.mxu0 %v103
  %v242 = vpop.f32.mrf.mxu0
  %v243 = vadd.f32 0.0, %v242
  %v244 = vpop.f32.mrf.mxu0
  %v245 = vadd.f32 0.0, %v244
  %246 = vmatmul.bf16.gmra.mxu0 %v105
  %v247 = vpop.f32.mrf.mxu0
  %v248 = vadd.f32 0.0, %v247
  %v249 = vpop.f32.mrf.mxu0
  %v250 = vadd.f32 0.0, %v249
  %251 = vdwg.mxu0
  %252 = vmatpush.bf16.xpose.msra.mxu0 %v186
  %253 = vmatpush.bf16.xpose.msra.mxu0 %v184
  %254 = vmatpush.bf16.xpose.msra.mxu0 %v182
  %255 = vmatpush.bf16.xpose.msra.mxu0 %v180
  %256 = vmatpush.bf16.xpose.msra.mxu0 %v178
  %257 = vmatpush.bf16.xpose.msra.mxu0 %v176
  %258 = vmatpush.bf16.xpose.msra.mxu0 %v174
  %259 = vmatpush.bf16.xpose.msra.mxu0 %v172
  %260 = vmatmul.bf16.gmra.mxu0 %v92
  %v261 = vpop.f32.mrf.mxu0
  %v262 = vadd.f32 %v213, %v261
  %v263 = vpop.f32.mrf.mxu0
  %v264 = vadd.f32 %v215, %v263
  %265 = vmatmul.bf16.gmra.mxu0 %v94
  %v266 = vpop.f32.mrf.mxu0
  %v267 = vadd.f32 %v218, %v266
  %v268 = vpop.f32.mrf.mxu0
  %v269 = vadd.f32 %v220, %v268
  %270 = vmatmul.bf16.gmra.mxu0 %v96
  %v271 = vpop.f32.mrf.mxu0
  %v272 = vadd.f32 %v223, %v271
  %v273 = vpop.f32.mrf.mxu0
  %v274 = vadd.f32 %v225, %v273
  %275 = vmatmul.bf16.gmra.mxu0 %v98
  %v276 = vpop.f32.mrf.mxu0
  %v277 = vadd.f32 %v228, %v276
  %v278 = vpop.f32.mrf.mxu0
  %v279 = vadd.f32 %v230, %v278
  %280 = vmatmul.bf16.gmra.mxu0 %v100
  %v281 = vpop.f32.mrf.mxu0
  %v282 = vadd.f32 %v233, %v281
  %v283 = vpop.f32.mrf.mxu0
  %v284 = vadd.f32 %v235, %v283
  %285 = vmatmul.bf16.gmra.mxu0 %v102
  %v286 = vpop.f32.mrf.mxu0
  %v287 = vadd.f32 %v238, %v286
  %v288 = vpop.f32.mrf.mxu0
  %v289 = vadd.f32 %v240, %v288
  %290 = vmatmul.bf16.gmra.mxu0 %v104
  %v291 = vpop.f32.mrf.mxu0
  %v292 = vadd.f32 %v243, %v291
  %v293 = vpop.f32.mrf.mxu0
  %v294 = vadd.f32 %v245, %v293
  %295 = vmatmul.bf16.gmra.mxu0 %v106
  %v296 = vpop.f32.mrf.mxu0
  %v297 = vadd.f32 %v248, %v296
  %v298 = vpop.f32.mrf.mxu0
  %v299 = vadd.f32 %v250, %v298
  %300 = vdwg.mxu0
  %301 = vst [vmem:[%s2] sm:$0xff] %v262
  %302 = vst [vmem:[%s2 + $0x8] sm:$0xff] %v264
  %303 = vst [vmem:[%s2 + $0x10] sm:$0xff] %v267
  %304 = vst [vmem:[%s2 + $0x18] sm:$0xff] %v269
  %305 = vst [vmem:[%s2 + $0x20] sm:$0xff] %v272
  %306 = vst [vmem:[%s2 + $0x28] sm:$0xff] %v274
  %307 = vst [vmem:[%s2 + $0x30] sm:$0xff] %v277
  %308 = vst [vmem:[%s2 + $0x38] sm:$0xff] %v279
  %309 = vst [vmem:[%s2 + $0x40] sm:$0xff] %v282
  %310 = vst [vmem:[%s2 + $0x48] sm:$0xff] %v284
  %311 = vst [vmem:[%s2 + $0x50] sm:$0xff] %v287
  %312 = vst [vmem:[%s2 + $0x58] sm:$0xff] %v289
  %313 = vst [vmem:[%s2 + $0x60] sm:$0xff] %v292
  %314 = vst [vmem:[%s2 + $0x68] sm:$0xff] %v294
  %315 = vst [vmem:[%s2 + $0x70] sm:$0xff] %v297
  %316 = vst [vmem:[%s2 + $0x78] sm:$0xff] %v299
  // Predicated region
  $region10: #{global_discriminator_dot.9} parent=0 // pred_check
    _
  $region11: #{global_discriminator_dot.9} parent=0 // pred_check_branch
    %318 = sbr.rel (0) target = $region13
  $region12: #{global_discriminator_dot.9} parent=0 // pred_region
    _
  $region13: #{global_discriminator_dot.9} parent=0 // pred_fallthru
    _
  // Predicated region
  $region14: #{global_discriminator_dot.9} parent=0 // pred_check
    _
  $region15: #{global_discriminator_dot.9} parent=0 // pred_check_branch
    %320 = sbr.rel (0) target = $region17
  $region16: #{global_discriminator_dot.9} parent=0 // pred_region
    _
  $region17: #{global_discriminator_dot.9} parent=0 // pred_fallthru
    _

// kernel: global_discriminator_dot.6
$region0: #{global_discriminator_dot.6}
  #allocation0 [shape = 'u32[]', space=smem, size = 0x4, offset = 0x4, fixed_abs, tag = 'smem constant byte address 0x4 - core index']
  #allocation1 [shape = 'u32[72,128]{1,0:T(1,128)}', space=vmem, size = 0x9000, scoped, tag = 'internal scratch']
  #allocation2 [shape = 's32[1]{0}', space=sflag, size = 0x4, scoped, tag = 'scoped memory for global_discriminator_dot.6']
  #allocation3 [shape = 'f32[1]{0:T(128)S(6)}', space=smem, size = 0x200, scoped, tag = 'prefetched SMEM operand 0']
  %s0 = inlined_call_operand.<no memory space> [shape: f32[1], index: 0, kind: input, shape index: {}]
  %s1 = inlined_call_operand.vmem [shape: bf16[128,512], index: 1, kind: input, shape index: {}]
  %s2 = inlined_call_operand.vmem [shape: f32[8,256], index: 2, kind: input, shape index: {}]
  %s3 = inlined_call_operand.vmem [shape: f32[8,256], index: 3, kind: input, shape index: {}]
  %s4 = inlined_call_operand.vmem [shape: bf16[256,256], index: 4, kind: input, shape index: {}]
  %s5 = inlined_call_operand.vmem [shape: f32[128,256], index: 5, kind: output, shape index: {0}]
  %s6 = inlined_call_operand.vmem [shape: bf16[128,256], index: 6, kind: output, shape index: {1}]
  %7 = xla_tuple %s5, %s6
  %s8 = sld [smem:[#allocation0]]
  $region34: #{global_discriminator_dot.6} parent=0
    _
  %s10 = ssub.s32 1, %s8
  %s11 = scalar_select 0, %s10, %s8
  %12 = sst [smem:[#allocation3]] %s0
  // Predicated region
  $region2: #{global_discriminator_dot.6} parent=0 // pred_check
    _
  $region3: #{global_discriminator_dot.6} parent=0 // pred_check_branch
    %14 = sbr.rel (0) target = $region5
  $region4: #{global_discriminator_dot.6} parent=0 // pred_region
    _
  $region5: #{global_discriminator_dot.6} parent=0 // pred_fallthru
    _
  // Predicated region
  $region6: #{global_discriminator_dot.6} parent=0 // pred_check
    _
  $region7: #{global_discriminator_dot.6} parent=0 // pred_check_branch
    %16 = sbr.rel (0) target = $region9
  $region8: #{global_discriminator_dot.6} parent=0 // pred_region
    _
  $region9: #{global_discriminator_dot.6} parent=0 // pred_fallthru
    _
  // Predicated region
  $region10: #{global_discriminator_dot.6} parent=0 // pred_check
    _
  $region11: #{global_discriminator_dot.6} parent=0 // pred_check_branch
    %18 = sbr.rel (0) target = $region13
  $region12: #{global_discriminator_dot.6} parent=0 // pred_region
    _
  $region13: #{global_discriminator_dot.6} parent=0 // pred_fallthru
    _
  // Predicated region
  $region14: #{global_discriminator_dot.6} parent=0 // pred_check
    _
  $region15: #{global_discriminator_dot.6} parent=0 // pred_check_branch
    %20 = sbr.rel (0) target = $region17
  $region16: #{global_discriminator_dot.6} parent=0 // pred_region
    _
  $region17: #{global_discriminator_dot.6} parent=0 // pred_fallthru
    _
  %v21 = vld [vmem:[%s2] sm:$0xff]
  %v22 = vld [vmem:[%s2 + $0x8] sm:$0xff]
  %v23 = vmul.f32 %v21, 0.125
  %v24 = vmul.f32 %v22, 0.125
  %v25 = vmul.f32 %v23, %v23
  %v26 = vmul.f32 %v24, %v24
  %v29 = vrot.slane %v25, 7
  %v30 = vrot.slane %v26, 7
  %v33 = vsub.f32 %v23, %v29
  %v34 = vsub.f32 %v24, %v30
  %v35 = vld [vmem:[%s3] sm:$0xff]
  %v36 = vld [vmem:[%s3 + $0x8] sm:$0xff]
  %v37 = vadd.f32 %v33, 1e-05
  %v38 = vadd.f32 %v34, 1e-05
  %v39 = vrsqrt.pop %v37
  %v40 = vmul.f32 %v39, %v37
  %v41 = vmul.f32 %v40, %v39
  %v42 = vmul.f32 0.5, %v41
  %v43 = vsub.f32 1.5, %v42
  %v44 = vmul.f32 %v39, %v43
  %vm45 = vweird.f32 %v37
  %vm46 = vweird.f32 %v39
  %vm47 = vmor %vm45, %vm46
  %v48 = vsel %vm47, %v39, %v44
  %v49 = vrsqrt.pop %v38
  %v50 = vmul.f32 %v49, %v38
  %v51 = vmul.f32 %v50, %v49
  %v52 = vmul.f32 0.5, %v51
  %v53 = vsub.f32 1.5, %v52
  %v54 = vmul.f32 %v49, %v53
  %vm55 = vweird.f32 %v38
  %vm56 = vweird.f32 %v49
  %vm57 = vmor %vm55, %vm56
  %v58 = vsel %vm57, %v49, %v54
  %v61 = vrot.slane %v48, 1
  %v62 = vrot.slane %v58, 1
  %v65 = vmul.f32 %v35, %v61
  %v66 = vmul.f32 %v36, %v62
  %v67 = vmul.f32 %v23, %v65
  %v68 = vmul.f32 %v24, %v66
  %v71 = vrot.slane %v67, 7
  %v72 = vrot.slane %v68, 7
  %v75 = vsub.f32 %v35, %v71
  %v76 = vsub.f32 %v36, %v72
  %v77 = vld [vmem:[%s1] sm:$0xff]
  %v78 = vld [vmem:[%s1 + $0x8] sm:$0xff]
  %v79 = vld [vmem:[%s1 + $0x10] sm:$0xff]
  %v80 = vld [vmem:[%s1 + $0x18] sm:$0xff]
  %v81 = vld [vmem:[%s1 + $0x20] sm:$0xff]
  %v82 = vld [vmem:[%s1 + $0x28] sm:$0xff]
  %v83 = vld [vmem:[%s1 + $0x30] sm:$0xff]
  %v84 = vld [vmem:[%s1 + $0x38] sm:$0xff]
  %v85 = vld [vmem:[%s1 + $0x40] sm:$0xff]
  %v86 = vld [vmem:[%s1 + $0x48] sm:$0xff]
  %v87 = vld [vmem:[%s1 + $0x50] sm:$0xff]
  %v88 = vld [vmem:[%s1 + $0x58] sm:$0xff]
  %v89 = vld [vmem:[%s1 + $0x60] sm:$0xff]
  %v90 = vld [vmem:[%s1 + $0x68] sm:$0xff]
  %v91 = vld [vmem:[%s1 + $0x70] sm:$0xff]
  %v92 = vld [vmem:[%s1 + $0x78] sm:$0xff]
  %v93 = vld [vmem:[%s1 + $0x80] sm:$0xff]
  %v94 = vld [vmem:[%s1 + $0x88] sm:$0xff]
  %v95 = vld [vmem:[%s1 + $0x90] sm:$0xff]
  %v96 = vld [vmem:[%s1 + $0x98] sm:$0xff]
  %v97 = vld [vmem:[%s1 + $0xa0] sm:$0xff]
  %v98 = vld [vmem:[%s1 + $0xa8] sm:$0xff]
  %v99 = vld [vmem:[%s1 + $0xb0] sm:$0xff]
  %v100 = vld [vmem:[%s1 + $0xb8] sm:$0xff]
  %v101 = vld [vmem:[%s1 + $0xc0] sm:$0xff]
  %v102 = vld [vmem:[%s1 + $0xc8] sm:$0xff]
  %v103 = vld [vmem:[%s1 + $0xd0] sm:$0xff]
  %v104 = vld [vmem:[%s1 + $0xd8] sm:$0xff]
  %v105 = vld [vmem:[%s1 + $0xe0] sm:$0xff]
  %v106 = vld [vmem:[%s1 + $0xe8] sm:$0xff]
  %v107 = vld [vmem:[%s1 + $0xf0] sm:$0xff]
  %v108 = vld [vmem:[%s1 + $0xf8] sm:$0xff]
  %v109 = vunpack.c.l.bf16 %v77
  %v110 = vunpack.c.h.bf16 %v77
  %v111 = vunpack.c.l.bf16 %v79
  %v112 = vunpack.c.h.bf16 %v79
  %v113 = vunpack.c.l.bf16 %v81
  %v114 = vunpack.c.h.bf16 %v81
  %v115 = vunpack.c.l.bf16 %v83
  %v116 = vunpack.c.h.bf16 %v83
  %v117 = vunpack.c.l.bf16 %v85
  %v118 = vunpack.c.h.bf16 %v85
  %v119 = vunpack.c.l.bf16 %v87
  %v120 = vunpack.c.h.bf16 %v87
  %v121 = vunpack.c.l.bf16 %v89
  %v122 = vunpack.c.h.bf16 %v89
  %v123 = vunpack.c.l.bf16 %v91
  %v124 = vunpack.c.h.bf16 %v91
  %v125 = vunpack.c.l.bf16 %v93
  %v126 = vunpack.c.h.bf16 %v93
  %v127 = vunpack.c.l.bf16 %v95
  %v128 = vunpack.c.h.bf16 %v95
  %v129 = vunpack.c.l.bf16 %v97
  %v130 = vunpack.c.h.bf16 %v97
  %v131 = vunpack.c.l.bf16 %v99
  %v132 = vunpack.c.h.bf16 %v99
  %v133 = vunpack.c.l.bf16 %v101
  %v134 = vunpack.c.h.bf16 %v101
  %v135 = vunpack.c.l.bf16 %v103
  %v136 = vunpack.c.h.bf16 %v103
  %v137 = vunpack.c.l.bf16 %v105
  %v138 = vunpack.c.h.bf16 %v105
  %v139 = vunpack.c.l.bf16 %v107
  %v140 = vunpack.c.h.bf16 %v107
  %v141 = vunpack.c.l.bf16 %v78
  %v142 = vunpack.c.h.bf16 %v78
  %v143 = vunpack.c.l.bf16 %v80
  %v144 = vunpack.c.h.bf16 %v80
  %v145 = vunpack.c.l.bf16 %v82
  %v146 = vunpack.c.h.bf16 %v82
  %v147 = vunpack.c.l.bf16 %v84
  %v148 = vunpack.c.h.bf16 %v84
  %v149 = vunpack.c.l.bf16 %v86
  %v150 = vunpack.c.h.bf16 %v86
  %v151 = vunpack.c.l.bf16 %v88
  %v152 = vunpack.c.h.bf16 %v88
  %v153 = vunpack.c.l.bf16 %v90
  %v154 = vunpack.c.h.bf16 %v90
  %v155 = vunpack.c.l.bf16 %v92
  %v156 = vunpack.c.h.bf16 %v92
  %v157 = vunpack.c.l.bf16 %v94
  %v158 = vunpack.c.h.bf16 %v94
  %v159 = vunpack.c.l.bf16 %v96
  %v160 = vunpack.c.h.bf16 %v96
  %v161 = vunpack.c.l.bf16 %v98
  %v162 = vunpack.c.h.bf16 %v98
  %v163 = vunpack.c.l.bf16 %v100
  %v164 = vunpack.c.h.bf16 %v100
  %v165 = vunpack.c.l.bf16 %v102
  %v166 = vunpack.c.h.bf16 %v102
  %v167 = vunpack.c.l.bf16 %v104
  %v168 = vunpack.c.h.bf16 %v104
  %v169 = vunpack.c.l.bf16 %v106
  %v170 = vunpack.c.h.bf16 %v106
  %v171 = vunpack.c.l.bf16 %v108
  %v172 = vunpack.c.h.bf16 %v108
  %v173 = vperm.slane %v65, 0
  %v174 = vperm.slane %v66, 0
  %v175 = vmul.f32 %v109, %v173
  %v176 = vmul.f32 %v110, %v174
  %v177 = vmul.f32 %v111, %v173
  %v178 = vmul.f32 %v112, %v174
  %v179 = vmul.f32 %v113, %v173
  %v180 = vmul.f32 %v114, %v174
  %v181 = vmul.f32 %v115, %v173
  %v182 = vmul.f32 %v116, %v174
  %v183 = vmul.f32 %v117, %v173
  %v184 = vmul.f32 %v118, %v174
  %v185 = vmul.f32 %v119, %v173
  %v186 = vmul.f32 %v120, %v174
  %v187 = vmul.f32 %v121, %v173
  %v188 = vmul.f32 %v122, %v174
  %v189 = vmul.f32 %v123, %v173
  %v190 = vmul.f32 %v124, %v174
  %v191 = vmul.f32 %v125, %v173
  %v192 = vmul.f32 %v126, %v174
  %v193 = vmul.f32 %v127, %v173
  %v194 = vmul.f32 %v128, %v174
  %v195 = vmul.f32 %v129, %v173
  %v196 = vmul.f32 %v130, %v174
  %v197 = vmul.f32 %v131, %v173
  %v198 = vmul.f32 %v132, %v174
  %v199 = vmul.f32 %v133, %v173
  %v200 = vmul.f32 %v134, %v174
  %v201 = vmul.f32 %v135, %v173
  %v202 = vmul.f32 %v136, %v174
  %v203 = vmul.f32 %v137, %v173
  %v204 = vmul.f32 %v138, %v174
  %v205 = vmul.f32 %v139, %v173
  %v206 = vmul.f32 %v140, %v174
  %v207 = vperm.slane %v75, 1
  %v208 = vperm.slane %v76, 1
  %v209 = vadd.f32 %v175, %v207
  %v210 = vadd.f32 %v176, %v208
  %v211 = vadd.f32 %v177, %v207
  %v212 = vadd.f32 %v178, %v208
  %v213 = vadd.f32 %v179, %v207
  %v214 = vadd.f32 %v180, %v208
  %v215 = vadd.f32 %v181, %v207
  %v216 = vadd.f32 %v182, %v208
  %v217 = vadd.f32 %v183, %v207
  %v218 = vadd.f32 %v184, %v208
  %v219 = vadd.f32 %v185, %v207
  %v220 = vadd.f32 %v186, %v208
  %v221 = vadd.f32 %v187, %v207
  %v222 = vadd.f32 %v188, %v208
  %v223 = vadd.f32 %v189, %v207
  %v224 = vadd.f32 %v190, %v208
  %v225 = vadd.f32 %v191, %v207
  %v226 = vadd.f32 %v192, %v208
  %v227 = vadd.f32 %v193, %v207
  %v228 = vadd.f32 %v194, %v208
  %v229 = vadd.f32 %v195, %v207
  %v230 = vadd.f32 %v196, %v208
  %v231 = vadd.f32 %v197, %v207
  %v232 = vadd.f32 %v198, %v208
  %v233 = vadd.f32 %v199, %v207
  %v234 = vadd.f32 %v200, %v208
  %v235 = vadd.f32 %v201, %v207
  %v236 = vadd.f32 %v202, %v208
  %v237 = vadd.f32 %v203, %v207
  %v238 = vadd.f32 %v204, %v208
  %v239 = vadd.f32 %v205, %v207
  %v240 = vadd.f32 %v206, %v208
  %v241 = vmax.f32 %v209, 0.0
  %v242 = vmax.f32 %v210, 0.0
  %v243 = vmax.f32 %v211, 0.0
  %v244 = vmax.f32 %v212, 0.0
  %v245 = vmax.f32 %v213, 0.0
  %v246 = vmax.f32 %v214, 0.0
  %v247 = vmax.f32 %v215, 0.0
  %v248 = vmax.f32 %v216, 0.0
  %v249 = vmax.f32 %v217, 0.0
  %v250 = vmax.f32 %v218, 0.0
  %v251 = vmax.f32 %v219, 0.0
  %v252 = vmax.f32 %v220, 0.0
  %v253 = vmax.f32 %v221, 0.0
  %v254 = vmax.f32 %v222, 0.0
  %v255 = vmax.f32 %v223, 0.0
  %v256 = vmax.f32 %v224, 0.0
  %v257 = vmax.f32 %v225, 0.0
  %v258 = vmax.f32 %v226, 0.0
  %v259 = vmax.f32 %v227, 0.0
  %v260 = vmax.f32 %v228, 0.0
  %v261 = vmax.f32 %v229, 0.0
  %v262 = vmax.f32 %v230, 0.0
  %v263 = vmax.f32 %v231, 0.0
  %v264 = vmax.f32 %v232, 0.0
  %v265 = vmax.f32 %v233, 0.0
  %v266 = vmax.f32 %v234, 0.0
  %v267 = vmax.f32 %v235, 0.0
  %v268 = vmax.f32 %v236, 0.0
  %v269 = vmax.f32 %v237, 0.0
  %v270 = vmax.f32 %v238, 0.0
  %v271 = vmax.f32 %v239, 0.0
  %v272 = vmax.f32 %v240, 0.0
  %v273 = vpack.c.bf16 %v243, %v241
  %v274 = vpack.c.bf16 %v244, %v242
  %v275 = vpack.c.bf16 %v247, %v245
  %v276 = vpack.c.bf16 %v248, %v246
  %v277 = vpack.c.bf16 %v251, %v249
  %v278 = vpack.c.bf16 %v252, %v250
  %v279 = vpack.c.bf16 %v255, %v253
  %v280 = vpack.c.bf16 %v256, %v254
  %v281 = vpack.c.bf16 %v259, %v257
  %v282 = vpack.c.bf16 %v260, %v258
  %v283 = vpack.c.bf16 %v263, %v261
  %v284 = vpack.c.bf16 %v264, %v262
  %v285 = vpack.c.bf16 %v267, %v265
  %v286 = vpack.c.bf16 %v268, %v266
  %v287 = vpack.c.bf16 %v271, %v269
  %v288 = vpack.c.bf16 %v272, %v270
  %v289 = vld [vmem:[%s4] sm:$0xff]
  %v290 = vld [vmem:[%s4 + $0x8] sm:$0xff]
  %v291 = vld [vmem:[%s4 + $0x10] sm:$0xff]
  %v292 = vld [vmem:[%s4 + $0x18] sm:$0xff]
  %v293 = vld [vmem:[%s4 + $0x20] sm:$0xff]
  %v294 = vld [vmem:[%s4 + $0x28] sm:$0xff]
  %v295 = vld [vmem:[%s4 + $0x30] sm:$0xff]
  %v296 = vld [vmem:[%s4 + $0x38] sm:$0xff]
  %v297 = vld [vmem:[%s4 + $0x40] sm:$0xff]
  %v298 = vld [vmem:[%s4 + $0x48] sm:$0xff]
  %v299 = vld [vmem:[%s4 + $0x50] sm:$0xff]
  %v300 = vld [vmem:[%s4 + $0x58] sm:$0xff]
  %v301 = vld [vmem:[%s4 + $0x60] sm:$0xff]
  %v302 = vld [vmem:[%s4 + $0x68] sm:$0xff]
  %v303 = vld [vmem:[%s4 + $0x70] sm:$0xff]
  %v304 = vld [vmem:[%s4 + $0x78] sm:$0xff]
  %v305 = vld [vmem:[%s4 + $0x80] sm:$0xff]
  %v306 = vld [vmem:[%s4 + $0x88] sm:$0xff]
  %v307 = vld [vmem:[%s4 + $0x90] sm:$0xff]
  %v308 = vld [vmem:[%s4 + $0x98] sm:$0xff]
  %v309 = vld [vmem:[%s4 + $0xa0] sm:$0xff]
  %v310 = vld [vmem:[%s4 + $0xa8] sm:$0xff]
  %v311 = vld [vmem:[%s4 + $0xb0] sm:$0xff]
  %v312 = vld [vmem:[%s4 + $0xb8] sm:$0xff]
  %v313 = vld [vmem:[%s4 + $0xc0] sm:$0xff]
  %v314 = vld [vmem:[%s4 + $0xc8] sm:$0xff]
  %v315 = vld [vmem:[%s4 + $0xd0] sm:$0xff]
  %v316 = vld [vmem:[%s4 + $0xd8] sm:$0xff]
  %v317 = vld [vmem:[%s4 + $0xe0] sm:$0xff]
  %v318 = vld [vmem:[%s4 + $0xe8] sm:$0xff]
  %v319 = vld [vmem:[%s4 + $0xf0] sm:$0xff]
  %v320 = vld [vmem:[%s4 + $0xf8] sm:$0xff]
  %v353 = vunpack.c.l.b16 %v289
  %v354 = vunpack.c.h.b16 %v289
  %v355 = vunpack.c.l.b16 %v290
  %v356 = vunpack.c.h.b16 %v290
  %v357 = vunpack.c.l.b16 %v291
  %v358 = vunpack.c.h.b16 %v291
  %v359 = vunpack.c.l.b16 %v292
  %v360 = vunpack.c.h.b16 %v292
  %v361 = vunpack.c.l.b16 %v293
  %v362 = vunpack.c.h.b16 %v293
  %v363 = vunpack.c.l.b16 %v294
  %v364 = vunpack.c.h.b16 %v294
  %v365 = vunpack.c.l.b16 %v295
  %v366 = vunpack.c.h.b16 %v295
  %v367 = vunpack.c.l.b16 %v296
  %v368 = vunpack.c.h.b16 %v296
  %v369 = vunpack.c.l.b16 %v297
  %v370 = vunpack.c.h.b16 %v297
  %v371 = vunpack.c.l.b16 %v298
  %v372 = vunpack.c.h.b16 %v298
  %v373 = vunpack.c.l.b16 %v299
  %v374 = vunpack.c.h.b16 %v299
  %v375 = vunpack.c.l.b16 %v300
  %v376 = vunpack.c.h.b16 %v300
  %v377 = vunpack.c.l.b16 %v301
  %v378 = vunpack.c.h.b16 %v301
  %v379 = vunpack.c.l.b16 %v302
  %v380 = vunpack.c.h.b16 %v302
  %v381 = vunpack.c.l.b16 %v303
  %v382 = vunpack.c.h.b16 %v303
  %v383 = vunpack.c.l.b16 %v304
  %v384 = vunpack.c.h.b16 %v304
  %v385 = vunpack.c.l.b16 %v305
  %v386 = vunpack.c.h.b16 %v305
  %v387 = vunpack.c.l.b16 %v306
  %v388 = vunpack.c.h.b16 %v306
  %v389 = vunpack.c.l.b16 %v307
  %v390 = vunpack.c.h.b16 %v307
  %v391 = vunpack.c.l.b16 %v308
  %v392 = vunpack.c.h.b16 %v308
  %v393 = vunpack.c.l.b16 %v309
  %v394 = vunpack.c.h.b16 %v309
  %v395 = vunpack.c.l.b16 %v310
  %v396 = vunpack.c.h.b16 %v310
  %v397 = vunpack.c.l.b16 %v311
  %v398 = vunpack.c.h.b16 %v311
  %v399 = vunpack.c.l.b16 %v312
  %v400 = vunpack.c.h.b16 %v312
  %v401 = vunpack.c.l.b16 %v313
  %v402 = vunpack.c.h.b16 %v313
  %v403 = vunpack.c.l.b16 %v314
  %v404 = vunpack.c.h.b16 %v314
  %v405 = vunpack.c.l.b16 %v315
  %v406 = vunpack.c.h.b16 %v315
  %v407 = vunpack.c.l.b16 %v316
  %v408 = vunpack.c.h.b16 %v316
  %v409 = vunpack.c.l.b16 %v317
  %v410 = vunpack.c.h.b16 %v317
  %v411 = vunpack.c.l.b16 %v318
  %v412 = vunpack.c.h.b16 %v318
  %v413 = vunpack.c.l.b16 %v319
  %v414 = vunpack.c.h.b16 %v319
  %v415 = vunpack.c.l.b16 %v320
  %v416 = vunpack.c.h.b16 %v320
  %v417 = vpack.c.b16 %v355, %v353
  %v418 = vpack.c.b16 %v356, %v354
  %v419 = vpack.c.b16 %v359, %v357
  %v420 = vpack.c.b16 %v360, %v358
  %v421 = vpack.c.b16 %v363, %v361
  %v422 = vpack.c.b16 %v364, %v362
  %v423 = vpack.c.b16 %v367, %v365
  %v424 = vpack.c.b16 %v368, %v366
  %v425 = vpack.c.b16 %v371, %v369
  %v426 = vpack.c.b16 %v372, %v370
  %v427 = vpack.c.b16 %v375, %v373
  %v428 = vpack.c.b16 %v376, %v374
  %v429 = vpack.c.b16 %v379, %v377
  %v430 = vpack.c.b16 %v380, %v378
  %v431 = vpack.c.b16 %v383, %v381
  %v432 = vpack.c.b16 %v384, %v382
  %v433 = vpack.c.b16 %v387, %v385
  %v434 = vpack.c.b16 %v388, %v386
  %v435 = vpack.c.b16 %v391, %v389
  %v436 = vpack.c.b16 %v392, %v390
  %v437 = vpack.c.b16 %v395, %v393
  %v438 = vpack.c.b16 %v396, %v394
  %v439 = vpack.c.b16 %v399, %v397
  %v440 = vpack.c.b16 %v400, %v398
  %v441 = vpack.c.b16 %v403, %v401
  %v442 = vpack.c.b16 %v404, %v402
  %v443 = vpack.c.b16 %v407, %v405
  %v444 = vpack.c.b16 %v408, %v406
  %v445 = vpack.c.b16 %v411, %v409
  %v446 = vpack.c.b16 %v412, %v410
  %v447 = vpack.c.b16 %v415, %v413
  %v448 = vpack.c.b16 %v416, %v414
  %481 = vmatpush.bf16.msra.mxu0 %v431
  %482 = vmatpush.bf16.msra.mxu0 %v429
  %483 = vmatpush.bf16.msra.mxu0 %v427
  %484 = vmatpush.bf16.msra.mxu0 %v425
  %485 = vmatpush.bf16.msra.mxu0 %v423
  %486 = vmatpush.bf16.msra.mxu0 %v421
  %487 = vmatpush.bf16.msra.mxu0 %v419
  %488 = vmatpush.bf16.msra.mxu0 %v417
  %489 = vmatmul.bf16.gmra.mxu0 %v273
  %v490 = vpop.f32.mrf.mxu0
  %v491 = vadd.f32 %v141, %v490
  %v492 = vpop.f32.mrf.mxu0
  %v493 = vadd.f32 %v143, %v492
  %494 = vmatmul.bf16.gmra.mxu0 %v275
  %v495 = vpop.f32.mrf.mxu0
  %v496 = vadd.f32 %v145, %v495
  %v497 = vpop.f32.mrf.mxu0
  %v498 = vadd.f32 %v147, %v497
  %499 = vmatmul.bf16.gmra.mxu0 %v277
  %v500 = vpop.f32.mrf.mxu0
  %v501 = vadd.f32 %v149, %v500
  %v502 = vpop.f32.mrf.mxu0
  %v503 = vadd.f32 %v151, %v502
  %504 = vmatmul.bf16.gmra.mxu0 %v279
  %v505 = vpop.f32.mrf.mxu0
  %v506 = vadd.f32 %v153, %v505
  %v507 = vpop.f32.mrf.mxu0
  %v508 = vadd.f32 %v155, %v507
  %509 = vmatmul.bf16.gmra.mxu0 %v281
  %v510 = vpop.f32.mrf.mxu0
  %v511 = vadd.f32 %v157, %v510
  %v512 = vpop.f32.mrf.mxu0
  %v513 = vadd.f32 %v159, %v512
  %514 = vmatmul.bf16.gmra.mxu0 %v283
  %v515 = vpop.f32.mrf.mxu0
  %v516 = vadd.f32 %v161, %v515
  %v517 = vpop.f32.mrf.mxu0
  %v518 = vadd.f32 %v163, %v517
  %519 = vmatmul.bf16.gmra.mxu0 %v285
  %v520 = vpop.f32.mrf.mxu0
  %v521 = vadd.f32 %v165, %v520
  %v522 = vpop.f32.mrf.mxu0
  %v523 = vadd.f32 %v167, %v522
  %524 = vmatmul.bf16.gmra.mxu0 %v287
  %v525 = vpop.f32.mrf.mxu0
  %v526 = vadd.f32 %v169, %v525
  %v527 = vpop.f32.mrf.mxu0
  %v528 = vadd.f32 %v171, %v527
  %529 = vdwg.mxu0
  %530 = vmatpush.bf16.msra.mxu0 %v447
  %531 = vmatpush.bf16.msra.mxu0 %v445
  %532 = vmatpush.bf16.msra.mxu0 %v443
  %533 = vmatpush.bf16.msra.mxu0 %v441
  %534 = vmatpush.bf16.msra.mxu0 %v439
  %535 = vmatpush.bf16.msra.mxu0 %v437
  %536 = vmatpush.bf16.msra.mxu0 %v435
  %537 = vmatpush.bf16.msra.mxu0 %v433
  %538 = vmatmul.bf16.gmra.mxu0 %v274
  %v539 = vpop.f32.mrf.mxu0
  %v540 = vadd.f32 %v491, %v539
  %v541 = vpop.f32.mrf.mxu0
  %v542 = vadd.f32 %v493, %v541
  %543 = vmatmul.bf16.gmra.mxu0 %v276
  %v544 = vpop.f32.mrf.mxu0
  %v545 = vadd.f32 %v496, %v544
  %v546 = vpop.f32.mrf.mxu0
  %v547 = vadd.f32 %v498, %v546
  %548 = vmatmul.bf16.gmra.mxu0 %v278
  %v549 = vpop.f32.mrf.mxu0
  %v550 = vadd.f32 %v501, %v549
  %v551 = vpop.f32.mrf.mxu0
  %v552 = vadd.f32 %v503, %v551
  %553 = vmatmul.bf16.gmra.mxu0 %v280
  %v554 = vpop.f32.mrf.mxu0
  %v555 = vadd.f32 %v506, %v554
  %v556 = vpop.f32.mrf.mxu0
  %v557 = vadd.f32 %v508, %v556
  %558 = vmatmul.bf16.gmra.mxu0 %v282
  %v559 = vpop.f32.mrf.mxu0
  %v560 = vadd.f32 %v511, %v559
  %v561 = vpop.f32.mrf.mxu0
  %v562 = vadd.f32 %v513, %v561
  %563 = vmatmul.bf16.gmra.mxu0 %v284
  %v564 = vpop.f32.mrf.mxu0
  %v565 = vadd.f32 %v516, %v564
  %v566 = vpop.f32.mrf.mxu0
  %v567 = vadd.f32 %v518, %v566
  %568 = vmatmul.bf16.gmra.mxu0 %v286
  %v569 = vpop.f32.mrf.mxu0
  %v570 = vadd.f32 %v521, %v569
  %v571 = vpop.f32.mrf.mxu0
  %v572 = vadd.f32 %v523, %v571
  %573 = vmatmul.bf16.gmra.mxu0 %v288
  %v574 = vpop.f32.mrf.mxu0
  %v575 = vadd.f32 %v526, %v574
  %v576 = vpop.f32.mrf.mxu0
  %v577 = vadd.f32 %v528, %v576
  %578 = vdwg.mxu0
  %579 = vmatpush.bf16.msra.mxu0 %v432
  %580 = vmatpush.bf16.msra.mxu0 %v430
  %581 = vmatpush.bf16.msra.mxu0 %v428
  %582 = vmatpush.bf16.msra.mxu0 %v426
  %583 = vmatpush.bf16.msra.mxu0 %v424
  %584 = vmatpush.bf16.msra.mxu0 %v422
  %585 = vmatpush.bf16.msra.mxu0 %v420
  %586 = vmatpush.bf16.msra.mxu0 %v418
  %587 = vmatmul.bf16.gmra.mxu0 %v273
  %v588 = vpop.f32.mrf.mxu0
  %v589 = vadd.f32 %v142, %v588
  %v590 = vpop.f32.mrf.mxu0
  %v591 = vadd.f32 %v144, %v590
  %592 = vmatmul.bf16.gmra.mxu0 %v275
  %v593 = vpop.f32.mrf.mxu0
  %v594 = vadd.f32 %v146, %v593
  %v595 = vpop.f32.mrf.mxu0
  %v596 = vadd.f32 %v148, %v595
  %597 = vmatmul.bf16.gmra.mxu0 %v277
  %v598 = vpop.f32.mrf.mxu0
  %v599 = vadd.f32 %v150, %v598
  %v600 = vpop.f32.mrf.mxu0
  %v601 = vadd.f32 %v152, %v600
  %602 = vmatmul.bf16.gmra.mxu0 %v279
  %v603 = vpop.f32.mrf.mxu0
  %v604 = vadd.f32 %v154, %v603
  %v605 = vpop.f32.mrf.mxu0
  %v606 = vadd.f32 %v156, %v605
  %607 = vmatmul.bf16.gmra.mxu0 %v281
  %v608 = vpop.f32.mrf.mxu0
  %v609 = vadd.f32 %v158, %v608
  %v610 = vpop.f32.mrf.mxu0
  %v611 = vadd.f32 %v160, %v610
  %612 = vmatmul.bf16.gmra.mxu0 %v283
  %v613 = vpop.f32.mrf.mxu0
  %v614 = vadd.f32 %v162, %v613
  %v615 = vpop.f32.mrf.mxu0
  %v616 = vadd.f32 %v164, %v615
  %617 = vmatmul.bf16.gmra.mxu0 %v285
  %v618 = vpop.f32.mrf.mxu0
  %v619 = vadd.f32 %v166, %v618
  %v620 = vpop.f32.mrf.mxu0
  %v621 = vadd.f32 %v168, %v620
  %622 = vmatmul.bf16.gmra.mxu0 %v287
  %v623 = vpop.f32.mrf.mxu0
  %v624 = vadd.f32 %v170, %v623
  %v625 = vpop.f32.mrf.mxu0
  %v626 = vadd.f32 %v172, %v625
  %627 = vdwg.mxu0
  %628 = vmatpush.bf16.msra.mxu0 %v448
  %629 = vmatpush.bf16.msra.mxu0 %v446
  %630 = vmatpush.bf16.msra.mxu0 %v444
  %631 = vmatpush.bf16.msra.mxu0 %v442
  %632 = vmatpush.bf16.msra.mxu0 %v440
  %633 = vmatpush.bf16.msra.mxu0 %v438
  %634 = vmatpush.bf16.msra.mxu0 %v436
  %635 = vmatpush.bf16.msra.mxu0 %v434
  %636 = vmatmul.bf16.gmra.mxu0 %v274
  %v637 = vpop.f32.mrf.mxu0
  %v638 = vadd.f32 %v589, %v637
  %v639 = vpop.f32.mrf.mxu0
  %v640 = vadd.f32 %v591, %v639
  %641 = vmatmul.bf16.gmra.mxu0 %v276
  %v642 = vpop.f32.mrf.mxu0
  %v643 = vadd.f32 %v594, %v642
  %v644 = vpop.f32.mrf.mxu0
  %v645 = vadd.f32 %v596, %v644
  %646 = vmatmul.bf16.gmra.mxu0 %v278
  %v647 = vpop.f32.mrf.mxu0
  %v648 = vadd.f32 %v599, %v647
  %v649 = vpop.f32.mrf.mxu0
  %v650 = vadd.f32 %v601, %v649
  %651 = vmatmul.bf16.gmra.mxu0 %v280
  %v652 = vpop.f32.mrf.mxu0
  %v653 = vadd.f32 %v604, %v652
  %v654 = vpop.f32.mrf.mxu0
  %v655 = vadd.f32 %v606, %v654
  %656 = vmatmul.bf16.gmra.mxu0 %v282
  %v657 = vpop.f32.mrf.mxu0
  %v658 = vadd.f32 %v609, %v657
  %v659 = vpop.f32.mrf.mxu0
  %v660 = vadd.f32 %v611, %v659
  %661 = vmatmul.bf16.gmra.mxu0 %v284
  %v662 = vpop.f32.mrf.mxu0
  %v663 = vadd.f32 %v614, %v662
  %v664 = vpop.f32.mrf.mxu0
  %v665 = vadd.f32 %v616, %v664
  %666 = vmatmul.bf16.gmra.mxu0 %v286
  %v667 = vpop.f32.mrf.mxu0
  %v668 = vadd.f32 %v619, %v667
  %v669 = vpop.f32.mrf.mxu0
  %v670 = vadd.f32 %v621, %v669
  %671 = vmatmul.bf16.gmra.mxu0 %v288
  %v672 = vpop.f32.mrf.mxu0
  %v673 = vadd.f32 %v624, %v672
  %v674 = vpop.f32.mrf.mxu0
  %v675 = vadd.f32 %v626, %v674
  %676 = vdwg.mxu0
  %v677 = vperm.slane %v35, 2
  %v678 = vperm.slane %v36, 2
  %v679 = vadd.f32 %v540, %v677
  %v680 = vadd.f32 %v638, %v678
  %v681 = vadd.f32 %v542, %v677
  %v682 = vadd.f32 %v640, %v678
  %v683 = vadd.f32 %v545, %v677
  %v684 = vadd.f32 %v643, %v678
  %v685 = vadd.f32 %v547, %v677
  %v686 = vadd.f32 %v645, %v678
  %v687 = vadd.f32 %v550, %v677
  %v688 = vadd.f32 %v648, %v678
  %v689 = vadd.f32 %v552, %v677
  %v690 = vadd.f32 %v650, %v678
  %v691 = vadd.f32 %v555, %v677
  %v692 = vadd.f32 %v653, %v678
  %v693 = vadd.f32 %v557, %v677
  %v694 = vadd.f32 %v655, %v678
  %v695 = vadd.f32 %v560, %v677
  %v696 = vadd.f32 %v658, %v678
  %v697 = vadd.f32 %v562, %v677
  %v698 = vadd.f32 %v660, %v678
  %v699 = vadd.f32 %v565, %v677
  %v700 = vadd.f32 %v663, %v678
  %v701 = vadd.f32 %v567, %v677
  %v702 = vadd.f32 %v665, %v678
  %v703 = vadd.f32 %v570, %v677
  %v704 = vadd.f32 %v668, %v678
  %v705 = vadd.f32 %v572, %v677
  %v706 = vadd.f32 %v670, %v678
  %v707 = vadd.f32 %v575, %v677
  %v708 = vadd.f32 %v673, %v678
  %v709 = vadd.f32 %v577, %v677
  %v710 = vadd.f32 %v675, %v678
  %v711 = vadd.f32 %v679, %v680
  %712 = vadd.xlane.f32.xlu0 %v711
  %v713 = vpop.xlane.xlu0 %712
  %v714 = vadd.f32 %v681, %v682
  %715 = vadd.xlane.f32.xlu0 %v714
  %v716 = vpop.xlane.xlu0 %715
  %v717 = vadd.f32 %v683, %v684
  %718 = vadd.xlane.f32.xlu0 %v717
  %v719 = vpop.xlane.xlu0 %718
  %v720 = vadd.f32 %v685, %v686
  %721 = vadd.xlane.f32.xlu0 %v720
  %v722 = vpop.xlane.xlu0 %721
  %v723 = vadd.f32 %v687, %v688
  %724 = vadd.xlane.f32.xlu0 %v723
  %v725 = vpop.xlane.xlu0 %724
  %v726 = vadd.f32 %v689, %v690
  %727 = vadd.xlane.f32.xlu0 %v726
  %v728 = vpop.xlane.xlu0 %727
  %v729 = vadd.f32 %v691, %v692
  %730 = vadd.xlane.f32.xlu0 %v729
  %v731 = vpop.xlane.xlu0 %730
  %v732 = vadd.f32 %v693, %v694
  %733 = vadd.xlane.f32.xlu0 %v732
  %v734 = vpop.xlane.xlu0 %733
  %v735 = vadd.f32 %v695, %v696
  %736 = vadd.xlane.f32.xlu0 %v735
  %v737 = vpop.xlane.xlu0 %736
  %v738 = vadd.f32 %v697, %v698
  %739 = vadd.xlane.f32.xlu0 %v738
  %v740 = vpop.xlane.xlu0 %739
  %v741 = vadd.f32 %v699, %v700
  %742 = vadd.xlane.f32.xlu0 %v741
  %v743 = vpop.xlane.xlu0 %742
  %v744 = vadd.f32 %v701, %v702
  %745 = vadd.xlane.f32.xlu0 %v744
  %v746 = vpop.xlane.xlu0 %745
  %v747 = vadd.f32 %v703, %v704
  %748 = vadd.xlane.f32.xlu0 %v747
  %v749 = vpop.xlane.xlu0 %748
  %v750 = vadd.f32 %v705, %v706
  %751 = vadd.xlane.f32.xlu0 %v750
  %v752 = vpop.xlane.xlu0 %751
  %v753 = vadd.f32 %v707, %v708
  %754 = vadd.xlane.f32.xlu0 %v753
  %v755 = vpop.xlane.xlu0 %754
  %v756 = vadd.f32 %v709, %v710
  %757 = vadd.xlane.f32.xlu0 %v756
  %v758 = vpop.xlane.xlu0 %757
  %v759 = vmul.f32 %v713, 0.00390625
  %v760 = vmul.f32 %v716, 0.00390625
  %v761 = vmul.f32 %v719, 0.00390625
  %v762 = vmul.f32 %v722, 0.00390625
  %v763 = vmul.f32 %v725, 0.00390625
  %v764 = vmul.f32 %v728, 0.00390625
  %v765 = vmul.f32 %v731, 0.00390625
  %v766 = vmul.f32 %v734, 0.00390625
  %v767 = vmul.f32 %v737, 0.00390625
  %v768 = vmul.f32 %v740, 0.00390625
  %v769 = vmul.f32 %v743, 0.00390625
  %v770 = vmul.f32 %v746, 0.00390625
  %v771 = vmul.f32 %v749, 0.00390625
  %v772 = vmul.f32 %v752, 0.00390625
  %v773 = vmul.f32 %v755, 0.00390625
  %v774 = vmul.f32 %v758, 0.00390625
  %v775 = vmul.f32 %v679, %v679
  %v776 = vmul.f32 %v680, %v680
  %v777 = vmul.f32 %v681, %v681
  %v778 = vmul.f32 %v682, %v682
  %v779 = vmul.f32 %v683, %v683
  %v780 = vmul.f32 %v684, %v684
  %v781 = vmul.f32 %v685, %v685
  %v782 = vmul.f32 %v686, %v686
  %v783 = vmul.f32 %v687, %v687
  %v784 = vmul.f32 %v688, %v688
  %v785 = vmul.f32 %v689, %v689
  %v786 = vmul.f32 %v690, %v690
  %v787 = vmul.f32 %v691, %v691
  %v788 = vmul.f32 %v692, %v692
  %v789 = vmul.f32 %v693, %v693
  %v790 = vmul.f32 %v694, %v694
  %v791 = vmul.f32 %v695, %v695
  %v792 = vmul.f32 %v696, %v696
  %v793 = vmul.f32 %v697, %v697
  %v794 = vmul.f32 %v698, %v698
  %v795 = vmul.f32 %v699, %v699
  %v796 = vmul.f32 %v700, %v700
  %v797 = vmul.f32 %v701, %v701
  %v798 = vmul.f32 %v702, %v702
  %v799 = vmul.f32 %v703, %v703
  %v800 = vmul.f32 %v704, %v704
  %v801 = vmul.f32 %v705, %v705
  %v802 = vmul.f32 %v706, %v706
  %v803 = vmul.f32 %v707, %v707
  %v804 = vmul.f32 %v708, %v708
  %v805 = vmul.f32 %v709, %v709
  %v806 = vmul.f32 %v710, %v710
  %v807 = vadd.f32 %v775, %v776
  %808 = vadd.xlane.f32.xlu0 %v807
  %v809 = vpop.xlane.xlu0 %808
  %v810 = vadd.f32 %v777, %v778
  %811 = vadd.xlane.f32.xlu0 %v810
  %v812 = vpop.xlane.xlu0 %811
  %v813 = vadd.f32 %v779, %v780
  %814 = vadd.xlane.f32.xlu0 %v813
  %v815 = vpop.xlane.xlu0 %814
  %v816 = vadd.f32 %v781, %v782
  %817 = vadd.xlane.f32.xlu0 %v816
  %v818 = vpop.xlane.xlu0 %817
  %v819 = vadd.f32 %v783, %v784
  %820 = vadd.xlane.f32.xlu0 %v819
  %v821 = vpop.xlane.xlu0 %820
  %v822 = vadd.f32 %v785, %v786
  %823 = vadd.xlane.f32.xlu0 %v822
  %v824 = vpop.xlane.xlu0 %823
  %v825 = vadd.f32 %v787, %v788
  %826 = vadd.xlane.f32.xlu0 %v825
  %v827 = vpop.xlane.xlu0 %826
  %v828 = vadd.f32 %v789, %v790
  %829 = vadd.xlane.f32.xlu0 %v828
  %v830 = vpop.xlane.xlu0 %829
  %v831 = vadd.f32 %v791, %v792
  %832 = vadd.xlane.f32.xlu0 %v831
  %v833 = vpop.xlane.xlu0 %832
  %v834 = vadd.f32 %v793, %v794
  %835 = vadd.xlane.f32.xlu0 %v834
  %v836 = vpop.xlane.xlu0 %835
  %v837 = vadd.f32 %v795, %v796
  %838 = vadd.xlane.f32.xlu0 %v837
  %v839 = vpop.xlane.xlu0 %838
  %v840 = vadd.f32 %v797, %v798
  %841 = vadd.xlane.f32.xlu0 %v840
  %v842 = vpop.xlane.xlu0 %841
  %v843 = vadd.f32 %v799, %v800
  %844 = vadd.xlane.f32.xlu0 %v843
  %v845 = vpop.xlane.xlu0 %844
  %v846 = vadd.f32 %v801, %v802
  %847 = vadd.xlane.f32.xlu0 %v846
  %v848 = vpop.xlane.xlu0 %847
  %v849 = vadd.f32 %v803, %v804
  %850 = vadd.xlane.f32.xlu0 %v849
  %v851 = vpop.xlane.xlu0 %850
  %v852 = vadd.f32 %v805, %v806
  %853 = vadd.xlane.f32.xlu0 %v852
  %v854 = vpop.xlane.xlu0 %853
  %v855 = vmul.f32 %v809, 0.00390625
  %v856 = vmul.f32 %v812, 0.00390625
  %v857 = vmul.f32 %v815, 0.00390625
  %v858 = vmul.f32 %v818, 0.00390625
  %v859 = vmul.f32 %v821, 0.00390625
  %v860 = vmul.f32 %v824, 0.00390625
  %v861 = vmul.f32 %v827, 0.00390625
  %v862 = vmul.f32 %v830, 0.00390625
  %v863 = vmul.f32 %v833, 0.00390625
  %v864 = vmul.f32 %v836, 0.00390625
  %v865 = vmul.f32 %v839, 0.00390625
  %v866 = vmul.f32 %v842, 0.00390625
  %v867 = vmul.f32 %v845, 0.00390625
  %v868 = vmul.f32 %v848, 0.00390625
  %v869 = vmul.f32 %v851, 0.00390625
  %v870 = vmul.f32 %v854, 0.00390625
  %v871 = vmul.f32 %v759, %v759
  %v872 = vmul.f32 %v760, %v760
  %v873 = vmul.f32 %v761, %v761
  %v874 = vmul.f32 %v762, %v762
  %v875 = vmul.f32 %v763, %v763
  %v876 = vmul.f32 %v764, %v764
  %v877 = vmul.f32 %v765, %v765
  %v878 = vmul.f32 %v766, %v766
  %v879 = vmul.f32 %v767, %v767
  %v880 = vmul.f32 %v768, %v768
  %v881 = vmul.f32 %v769, %v769
  %v882 = vmul.f32 %v770, %v770
  %v883 = vmul.f32 %v771, %v771
  %v884 = vmul.f32 %v772, %v772
  %v885 = vmul.f32 %v773, %v773
  %v886 = vmul.f32 %v774, %v774
  %v887 = vsub.f32 %v855, %v871
  %v888 = vsub.f32 %v856, %v872
  %v889 = vsub.f32 %v857, %v873
  %v890 = vsub.f32 %v858, %v874
  %v891 = vsub.f32 %v859, %v875
  %v892 = vsub.f32 %v860, %v876
  %v893 = vsub.f32 %v861, %v877
  %v894 = vsub.f32 %v862, %v878
  %v895 = vsub.f32 %v863, %v879
  %v896 = vsub.f32 %v864, %v880
  %v897 = vsub.f32 %v865, %v881
  %v898 = vsub.f32 %v866, %v882
  %v899 = vsub.f32 %v867, %v883
  %v900 = vsub.f32 %v868, %v884
  %v901 = vsub.f32 %v869, %v885
  %v902 = vsub.f32 %v870, %v886
  %v903 = vsub.f32 %v679, %v759
  %v904 = vsub.f32 %v680, %v759
  %v905 = vsub.f32 %v681, %v760
  %v906 = vsub.f32 %v682, %v760
  %v907 = vsub.f32 %v683, %v761
  %v908 = vsub.f32 %v684, %v761
  %v909 = vsub.f32 %v685, %v762
  %v910 = vsub.f32 %v686, %v762
  %v911 = vsub.f32 %v687, %v763
  %v912 = vsub.f32 %v688, %v763
  %v913 = vsub.f32 %v689, %v764
  %v914 = vsub.f32 %v690, %v764
  %v915 = vsub.f32 %v691, %v765
  %v916 = vsub.f32 %v692, %v765
  %v917 = vsub.f32 %v693, %v766
  %v918 = vsub.f32 %v694, %v766
  %v919 = vsub.f32 %v695, %v767
  %v920 = vsub.f32 %v696, %v767
  %v921 = vsub.f32 %v697, %v768
  %v922 = vsub.f32 %v698, %v768
  %v923 = vsub.f32 %v699, %v769
  %v924 = vsub.f32 %v700, %v769
  %v925 = vsub.f32 %v701, %v770
  %v926 = vsub.f32 %v702, %v770
  %v927 = vsub.f32 %v703, %v771
  %v928 = vsub.f32 %v704, %v771
  %v929 = vsub.f32 %v705, %v772
  %v930 = vsub.f32 %v706, %v772
  %v931 = vsub.f32 %v707, %v773
  %v932 = vsub.f32 %v708, %v773
  %v933 = vsub.f32 %v709, %v774
  %v934 = vsub.f32 %v710, %v774
  %v935 = vadd.f32 %v887, 1e-05
  %v936 = vadd.f32 %v888, 1e-05
  %v937 = vadd.f32 %v889, 1e-05
  %v938 = vadd.f32 %v890, 1e-05
  %v939 = vadd.f32 %v891, 1e-05
  %v940 = vadd.f32 %v892, 1e-05
  %v941 = vadd.f32 %v893, 1e-05
  %v942 = vadd.f32 %v894, 1e-05
  %v943 = vadd.f32 %v895, 1e-05
  %v944 = vadd.f32 %v896, 1e-05
  %v945 = vadd.f32 %v897, 1e-05
  %v946 = vadd.f32 %v898, 1e-05
  %v947 = vadd.f32 %v899, 1e-05
  %v948 = vadd.f32 %v900, 1e-05
  %v949 = vadd.f32 %v901, 1e-05
  %v950 = vadd.f32 %v902, 1e-05
  %v951 = vrsqrt.pop %v935
  %v952 = vmul.f32 %v951, %v935
  %v953 = vmul.f32 %v952, %v951
  %v954 = vmul.f32 0.5, %v953
  %v955 = vsub.f32 1.5, %v954
  %v956 = vmul.f32 %v951, %v955
  %vm957 = vweird.f32 %v935
  %vm958 = vweird.f32 %v951
  %vm959 = vmor %vm957, %vm958
  %v960 = vsel %vm959, %v951, %v956
  %v961 = vrsqrt.pop %v936
  %v962 = vmul.f32 %v961, %v936
  %v963 = vmul.f32 %v962, %v961
  %v964 = vmul.f32 0.5, %v963
  %v965 = vsub.f32 1.5, %v964
  %v966 = vmul.f32 %v961, %v965
  %vm967 = vweird.f32 %v936
  %vm968 = vweird.f32 %v961
  %vm969 = vmor %vm967, %vm968
  %v970 = vsel %vm969, %v961, %v966
  %v971 = vrsqrt.pop %v937
  %v972 = vmul.f32 %v971, %v937
  %v973 = vmul.f32 %v972, %v971
  %v974 = vmul.f32 0.5, %v973
  %v975 = vsub.f32 1.5, %v974
  %v976 = vmul.f32 %v971, %v975
  %vm977 = vweird.f32 %v937
  %vm978 = vweird.f32 %v971
  %vm979 = vmor %vm977, %vm978
  %v980 = vsel %vm979, %v971, %v976
  %v981 = vrsqrt.pop %v938
  %v982 = vmul.f32 %v981, %v938
  %v983 = vmul.f32 %v982, %v981
  %v984 = vmul.f32 0.5, %v983
  %v985 = vsub.f32 1.5, %v984
  %v986 = vmul.f32 %v981, %v985
  %vm987 = vweird.f32 %v938
  %vm988 = vweird.f32 %v981
  %vm989 = vmor %vm987, %vm988
  %v990 = vsel %vm989, %v981, %v986
  %v991 = vrsqrt.pop %v939
  %v992 = vmul.f32 %v991, %v939
  %v993 = vmul.f32 %v992, %v991
  %v994 = vmul.f32 0.5, %v993
  %v995 = vsub.f32 1.5, %v994
  %v996 = vmul.f32 %v991, %v995
  %vm997 = vweird.f32 %v939
  %vm998 = vweird.f32 %v991
  %vm999 = vmor %vm997, %vm998
  %v1000 = vsel %vm999, %v991, %v996
  %v1001 = vrsqrt.pop %v940
  %v1002 = vmul.f32 %v1001, %v940
  %v1003 = vmul.f32 %v1002, %v1001
  %v1004 = vmul.f32 0.5, %v1003
  %v1005 = vsub.f32 1.5, %v1004
  %v1006 = vmul.f32 %v1001, %v1005
  %vm1007 = vweird.f32 %v940
  %vm1008 = vweird.f32 %v1001
  %vm1009 = vmor %vm1007, %vm1008
  %v1010 = vsel %vm1009, %v1001, %v1006
  %v1011 = vrsqrt.pop %v941
  %v1012 = vmul.f32 %v1011, %v941
  %v1013 = vmul.f32 %v1012, %v1011
  %v1014 = vmul.f32 0.5, %v1013
  %v1015 = vsub.f32 1.5, %v1014
  %v1016 = vmul.f32 %v1011, %v1015
  %vm1017 = vweird.f32 %v941
  %vm1018 = vweird.f32 %v1011
  %vm1019 = vmor %vm1017, %vm1018
  %v1020 = vsel %vm1019, %v1011, %v1016
  %v1021 = vrsqrt.pop %v942
  %v1022 = vmul.f32 %v1021, %v942
  %v1023 = vmul.f32 %v1022, %v1021
  %v1024 = vmul.f32 0.5, %v1023
  %v1025 = vsub.f32 1.5, %v1024
  %v1026 = vmul.f32 %v1021, %v1025
  %vm1027 = vweird.f32 %v942
  %vm1028 = vweird.f32 %v1021
  %vm1029 = vmor %vm1027, %vm1028
  %v1030 = vsel %vm1029, %v1021, %v1026
  %v1031 = vrsqrt.pop %v943
  %v1032 = vmul.f32 %v1031, %v943
  %v1033 = vmul.f32 %v1032, %v1031
  %v1034 = vmul.f32 0.5, %v1033
  %v1035 = vsub.f32 1.5, %v1034
  %v1036 = vmul.f32 %v1031, %v1035
  %vm1037 = vweird.f32 %v943
  %vm1038 = vweird.f32 %v1031
  %vm1039 = vmor %vm1037, %vm1038
  %v1040 = vsel %vm1039, %v1031, %v1036
  %v1041 = vrsqrt.pop %v944
  %v1042 = vmul.f32 %v1041, %v944
  %v1043 = vmul.f32 %v1042, %v1041
  %v1044 = vmul.f32 0.5, %v1043
  %v1045 = vsub.f32 1.5, %v1044
  %v1046 = vmul.f32 %v1041, %v1045
  %vm1047 = vweird.f32 %v944
  %vm1048 = vweird.f32 %v1041
  %vm1049 = vmor %vm1047, %vm1048
  %v1050 = vsel %vm1049, %v1041, %v1046
  %v1051 = vrsqrt.pop %v945
  %v1052 = vmul.f32 %v1051, %v945
  %v1053 = vmul.f32 %v1052, %v1051
  %v1054 = vmul.f32 0.5, %v1053
  %v1055 = vsub.f32 1.5, %v1054
  %v1056 = vmul.f32 %v1051, %v1055
  %vm1057 = vweird.f32 %v945
  %vm1058 = vweird.f32 %v1051
  %vm1059 = vmor %vm1057, %vm1058
  %v1060 = vsel %vm1059, %v1051, %v1056
  %v1061 = vrsqrt.pop %v946
  %v1062 = vmul.f32 %v1061, %v946
  %v1063 = vmul.f32 %v1062, %v1061
  %v1064 = vmul.f32 0.5, %v1063
  %v1065 = vsub.f32 1.5, %v1064
  %v1066 = vmul.f32 %v1061, %v1065
  %vm1067 = vweird.f32 %v946
  %vm1068 = vweird.f32 %v1061
  %vm1069 = vmor %vm1067, %vm1068
  %v1070 = vsel %vm1069, %v1061, %v1066
  %v1071 = vrsqrt.pop %v947
  %v1072 = vmul.f32 %v1071, %v947
  %v1073 = vmul.f32 %v1072, %v1071
  %v1074 = vmul.f32 0.5, %v1073
  %v1075 = vsub.f32 1.5, %v1074
  %v1076 = vmul.f32 %v1071, %v1075
  %vm1077 = vweird.f32 %v947
  %vm1078 = vweird.f32 %v1071
  %vm1079 = vmor %vm1077, %vm1078
  %v1080 = vsel %vm1079, %v1071, %v1076
  %v1081 = vrsqrt.pop %v948
  %v1082 = vmul.f32 %v1081, %v948
  %v1083 = vmul.f32 %v1082, %v1081
  %v1084 = vmul.f32 0.5, %v1083
  %v1085 = vsub.f32 1.5, %v1084
  %v1086 = vmul.f32 %v1081, %v1085
  %vm1087 = vweird.f32 %v948
  %vm1088 = vweird.f32 %v1081
  %vm1089 = vmor %vm1087, %vm1088
  %v1090 = vsel %vm1089, %v1081, %v1086
  %v1091 = vrsqrt.pop %v949
  %v1092 = vmul.f32 %v1091, %v949
  %v1093 = vmul.f32 %v1092, %v1091
  %v1094 = vmul.f32 0.5, %v1093
  %v1095 = vsub.f32 1.5, %v1094
  %v1096 = vmul.f32 %v1091, %v1095
  %vm1097 = vweird.f32 %v949
  %vm1098 = vweird.f32 %v1091
  %vm1099 = vmor %vm1097, %vm1098
  %v1100 = vsel %vm1099, %v1091, %v1096
  %v1101 = vrsqrt.pop %v950
  %v1102 = vmul.f32 %v1101, %v950
  %v1103 = vmul.f32 %v1102, %v1101
  %v1104 = vmul.f32 0.5, %v1103
  %v1105 = vsub.f32 1.5, %v1104
  %v1106 = vmul.f32 %v1101, %v1105
  %vm1107 = vweird.f32 %v950
  %vm1108 = vweird.f32 %v1101
  %vm1109 = vmor %vm1107, %vm1108
  %v1110 = vsel %vm1109, %v1101, %v1106
  %v1111 = vmul.f32 %v903, %v960
  %v1112 = vmul.f32 %v904, %v960
  %v1113 = vmul.f32 %v905, %v970
  %v1114 = vmul.f32 %v906, %v970
  %v1115 = vmul.f32 %v907, %v980
  %v1116 = vmul.f32 %v908, %v980
  %v1117 = vmul.f32 %v909, %v990
  %v1118 = vmul.f32 %v910, %v990
  %v1119 = vmul.f32 %v911, %v1000
  %v1120 = vmul.f32 %v912, %v1000
  %v1121 = vmul.f32 %v913, %v1010
  %v1122 = vmul.f32 %v914, %v1010
  %v1123 = vmul.f32 %v915, %v1020
  %v1124 = vmul.f32 %v916, %v1020
  %v1125 = vmul.f32 %v917, %v1030
  %v1126 = vmul.f32 %v918, %v1030
  %v1127 = vmul.f32 %v919, %v1040
  %v1128 = vmul.f32 %v920, %v1040
  %v1129 = vmul.f32 %v921, %v1050
  %v1130 = vmul.f32 %v922, %v1050
  %v1131 = vmul.f32 %v923, %v1060
  %v1132 = vmul.f32 %v924, %v1060
  %v1133 = vmul.f32 %v925, %v1070
  %v1134 = vmul.f32 %v926, %v1070
  %v1135 = vmul.f32 %v927, %v1080
  %v1136 = vmul.f32 %v928, %v1080
  %v1137 = vmul.f32 %v929, %v1090
  %v1138 = vmul.f32 %v930, %v1090
  %v1139 = vmul.f32 %v931, %v1100
  %v1140 = vmul.f32 %v932, %v1100
  %v1141 = vmul.f32 %v933, %v1110
  %v1142 = vmul.f32 %v934, %v1110
  %v1143 = vperm.slane %v35, 3
  %v1144 = vperm.slane %v36, 3
  %v1145 = vmul.f32 %v1111, %v1143
  %v1146 = vmul.f32 %v1112, %v1144
  %v1147 = vmul.f32 %v1113, %v1143
  %v1148 = vmul.f32 %v1114, %v1144
  %v1149 = vmul.f32 %v1115, %v1143
  %v1150 = vmul.f32 %v1116, %v1144
  %v1151 = vmul.f32 %v1117, %v1143
  %v1152 = vmul.f32 %v1118, %v1144
  %v1153 = vmul.f32 %v1119, %v1143
  %v1154 = vmul.f32 %v1120, %v1144
  %v1155 = vmul.f32 %v1121, %v1143
  %v1156 = vmul.f32 %v1122, %v1144
  %v1157 = vmul.f32 %v1123, %v1143
  %v1158 = vmul.f32 %v1124, %v1144
  %v1159 = vmul.f32 %v1125, %v1143
  %v1160 = vmul.f32 %v1126, %v1144
  %v1161 = vmul.f32 %v1127, %v1143
  %v1162 = vmul.f32 %v1128, %v1144
  %v1163 = vmul.f32 %v1129, %v1143
  %v1164 = vmul.f32 %v1130, %v1144
  %v1165 = vmul.f32 %v1131, %v1143
  %v1166 = vmul.f32 %v1132, %v1144
  %v1167 = vmul.f32 %v1133, %v1143
  %v1168 = vmul.f32 %v1134, %v1144
  %v1169 = vmul.f32 %v1135, %v1143
  %v1170 = vmul.f32 %v1136, %v1144
  %v1171 = vmul.f32 %v1137, %v1143
  %v1172 = vmul.f32 %v1138, %v1144
  %v1173 = vmul.f32 %v1139, %v1143
  %v1174 = vmul.f32 %v1140, %v1144
  %v1175 = vmul.f32 %v1141, %v1143
  %v1176 = vmul.f32 %v1142, %v1144
  %v1177 = vperm.slane %v35, 4
  %v1178 = vperm.slane %v36, 4
  %v1179 = vadd.f32 %v1145, %v1177
  %v1180 = vadd.f32 %v1146, %v1178
  %v1181 = vadd.f32 %v1147, %v1177
  %v1182 = vadd.f32 %v1148, %v1178
  %v1183 = vadd.f32 %v1149, %v1177
  %v1184 = vadd.f32 %v1150, %v1178
  %v1185 = vadd.f32 %v1151, %v1177
  %v1186 = vadd.f32 %v1152, %v1178
  %v1187 = vadd.f32 %v1153, %v1177
  %v1188 = vadd.f32 %v1154, %v1178
  %v1189 = vadd.f32 %v1155, %v1177
  %v1190 = vadd.f32 %v1156, %v1178
  %v1191 = vadd.f32 %v1157, %v1177
  %v1192 = vadd.f32 %v1158, %v1178
  %v1193 = vadd.f32 %v1159, %v1177
  %v1194 = vadd.f32 %v1160, %v1178
  %v1195 = vadd.f32 %v1161, %v1177
  %v1196 = vadd.f32 %v1162, %v1178
  %v1197 = vadd.f32 %v1163, %v1177
  %v1198 = vadd.f32 %v1164, %v1178
  %v1199 = vadd.f32 %v1165, %v1177
  %v1200 = vadd.f32 %v1166, %v1178
  %v1201 = vadd.f32 %v1167, %v1177
  %v1202 = vadd.f32 %v1168, %v1178
  %v1203 = vadd.f32 %v1169, %v1177
  %v1204 = vadd.f32 %v1170, %v1178
  %v1205 = vadd.f32 %v1171, %v1177
  %v1206 = vadd.f32 %v1172, %v1178
  %v1207 = vadd.f32 %v1173, %v1177
  %v1208 = vadd.f32 %v1174, %v1178
  %v1209 = vadd.f32 %v1175, %v1177
  %v1210 = vadd.f32 %v1176, %v1178
  %v1211 = vmul.f32 %v1179, %v1179
  %v1212 = vmul.f32 %v1180, %v1180
  %v1213 = vmul.f32 %v1181, %v1181
  %v1214 = vmul.f32 %v1182, %v1182
  %v1215 = vmul.f32 %v1183, %v1183
  %v1216 = vmul.f32 %v1184, %v1184
  %v1217 = vmul.f32 %v1185, %v1185
  %v1218 = vmul.f32 %v1186, %v1186
  %v1219 = vmul.f32 %v1187, %v1187
  %v1220 = vmul.f32 %v1188, %v1188
  %v1221 = vmul.f32 %v1189, %v1189
  %v1222 = vmul.f32 %v1190, %v1190
  %v1223 = vmul.f32 %v1191, %v1191
  %v1224 = vmul.f32 %v1192, %v1192
  %v1225 = vmul.f32 %v1193, %v1193
  %v1226 = vmul.f32 %v1194, %v1194
  %v1227 = vmul.f32 %v1195, %v1195
  %v1228 = vmul.f32 %v1196, %v1196
  %v1229 = vmul.f32 %v1197, %v1197
  %v1230 = vmul.f32 %v1198, %v1198
  %v1231 = vmul.f32 %v1199, %v1199
  %v1232 = vmul.f32 %v1200, %v1200
  %v1233 = vmul.f32 %v1201, %v1201
  %v1234 = vmul.f32 %v1202, %v1202
  %v1235 = vmul.f32 %v1203, %v1203
  %v1236 = vmul.f32 %v1204, %v1204
  %v1237 = vmul.f32 %v1205, %v1205
  %v1238 = vmul.f32 %v1206, %v1206
  %v1239 = vmul.f32 %v1207, %v1207
  %v1240 = vmul.f32 %v1208, %v1208
  %v1241 = vmul.f32 %v1209, %v1209
  %v1242 = vmul.f32 %v1210, %v1210
  %v1243 = vadd.f32 %v1211, %v1212
  %1244 = vadd.xlane.f32.xlu0 %v1243
  %v1245 = vpop.xlane.xlu0 %1244
  %v1246 = vadd.f32 %v1213, %v1214
  %1247 = vadd.xlane.f32.xlu0 %v1246
  %v1248 = vpop.xlane.xlu0 %1247
  %v1249 = vadd.f32 %v1215, %v1216
  %1250 = vadd.xlane.f32.xlu0 %v1249
  %v1251 = vpop.xlane.xlu0 %1250
  %v1252 = vadd.f32 %v1217, %v1218
  %1253 = vadd.xlane.f32.xlu0 %v1252
  %v1254 = vpop.xlane.xlu0 %1253
  %v1255 = vadd.f32 %v1219, %v1220
  %1256 = vadd.xlane.f32.xlu0 %v1255
  %v1257 = vpop.xlane.xlu0 %1256
  %v1258 = vadd.f32 %v1221, %v1222
  %1259 = vadd.xlane.f32.xlu0 %v1258
  %v1260 = vpop.xlane.xlu0 %1259
  %v1261 = vadd.f32 %v1223, %v1224
  %1262 = vadd.xlane.f32.xlu0 %v1261
  %v1263 = vpop.xlane.xlu0 %1262
  %v1264 = vadd.f32 %v1225, %v1226
  %1265 = vadd.xlane.f32.xlu0 %v1264
  %v1266 = vpop.xlane.xlu0 %1265
  %v1267 = vadd.f32 %v1227, %v1228
  %1268 = vadd.xlane.f32.xlu0 %v1267
  %v1269 = vpop.xlane.xlu0 %1268
  %v1270 = vadd.f32 %v1229, %v1230
  %1271 = vadd.xlane.f32.xlu0 %v1270
  %v1272 = vpop.xlane.xlu0 %1271
  %v1273 = vadd.f32 %v1231, %v1232
  %1274 = vadd.xlane.f32.xlu0 %v1273
  %v1275 = vpop.xlane.xlu0 %1274
  %v1276 = vadd.f32 %v1233, %v1234
  %1277 = vadd.xlane.f32.xlu0 %v1276
  %v1278 = vpop.xlane.xlu0 %1277
  %v1279 = vadd.f32 %v1235, %v1236
  %1280 = vadd.xlane.f32.xlu0 %v1279
  %v1281 = vpop.xlane.xlu0 %1280
  %v1282 = vadd.f32 %v1237, %v1238
  %1283 = vadd.xlane.f32.xlu0 %v1282
  %v1284 = vpop.xlane.xlu0 %1283
  %v1285 = vadd.f32 %v1239, %v1240
  %1286 = vadd.xlane.f32.xlu0 %v1285
  %v1287 = vpop.xlane.xlu0 %1286
  %v1288 = vadd.f32 %v1241, %v1242
  %1289 = vadd.xlane.f32.xlu0 %v1288
  %v1290 = vpop.xlane.xlu0 %1289
  %v1291 = vmax.f32 %v1245, 1e-24
  %v1292 = vmax.f32 %v1248, 1e-24
  %v1293 = vmax.f32 %v1251, 1e-24
  %v1294 = vmax.f32 %v1254, 1e-24
  %v1295 = vmax.f32 %v1257, 1e-24
  %v1296 = vmax.f32 %v1260, 1e-24
  %v1297 = vmax.f32 %v1263, 1e-24
  %v1298 = vmax.f32 %v1266, 1e-24
  %v1299 = vmax.f32 %v1269, 1e-24
  %v1300 = vmax.f32 %v1272, 1e-24
  %v1301 = vmax.f32 %v1275, 1e-24
  %v1302 = vmax.f32 %v1278, 1e-24
  %v1303 = vmax.f32 %v1281, 1e-24
  %v1304 = vmax.f32 %v1284, 1e-24
  %v1305 = vmax.f32 %v1287, 1e-24
  %v1306 = vmax.f32 %v1290, 1e-24
  %v1307 = vrsqrt.pop %v1291
  %v1308 = vmul.f32 %v1307, %v1291
  %v1309 = vmul.f32 %v1308, %v1307
  %v1310 = vmul.f32 0.5, %v1309
  %v1311 = vsub.f32 1.5, %v1310
  %v1312 = vmul.f32 %v1307, %v1311
  %vm1313 = vweird.f32 %v1291
  %vm1314 = vweird.f32 %v1307
  %vm1315 = vmor %vm1313, %vm1314
  %v1316 = vsel %vm1315, %v1307, %v1312
  %v1317 = vrsqrt.pop %v1292
  %v1318 = vmul.f32 %v1317, %v1292
  %v1319 = vmul.f32 %v1318, %v1317
  %v1320 = vmul.f32 0.5, %v1319
  %v1321 = vsub.f32 1.5, %v1320
  %v1322 = vmul.f32 %v1317, %v1321
  %vm1323 = vweird.f32 %v1292
  %vm1324 = vweird.f32 %v1317
  %vm1325 = vmor %vm1323, %vm1324
  %v1326 = vsel %vm1325, %v1317, %v1322
  %v1327 = vrsqrt.pop %v1293
  %v1328 = vmul.f32 %v1327, %v1293
  %v1329 = vmul.f32 %v1328, %v1327
  %v1330 = vmul.f32 0.5, %v1329
  %v1331 = vsub.f32 1.5, %v1330
  %v1332 = vmul.f32 %v1327, %v1331
  %vm1333 = vweird.f32 %v1293
  %vm1334 = vweird.f32 %v1327
  %vm1335 = vmor %vm1333, %vm1334
  %v1336 = vsel %vm1335, %v1327, %v1332
  %v1337 = vrsqrt.pop %v1294
  %v1338 = vmul.f32 %v1337, %v1294
  %v1339 = vmul.f32 %v1338, %v1337
  %v1340 = vmul.f32 0.5, %v1339
  %v1341 = vsub.f32 1.5, %v1340
  %v1342 = vmul.f32 %v1337, %v1341
  %vm1343 = vweird.f32 %v1294
  %vm1344 = vweird.f32 %v1337
  %vm1345 = vmor %vm1343, %vm1344
  %v1346 = vsel %vm1345, %v1337, %v1342
  %v1347 = vrsqrt.pop %v1295
  %v1348 = vmul.f32 %v1347, %v1295
  %v1349 = vmul.f32 %v1348, %v1347
  %v1350 = vmul.f32 0.5, %v1349
  %v1351 = vsub.f32 1.5, %v1350
  %v1352 = vmul.f32 %v1347, %v1351
  %vm1353 = vweird.f32 %v1295
  %vm1354 = vweird.f32 %v1347
  %vm1355 = vmor %vm1353, %vm1354
  %v1356 = vsel %vm1355, %v1347, %v1352
  %v1357 = vrsqrt.pop %v1296
  %v1358 = vmul.f32 %v1357, %v1296
  %v1359 = vmul.f32 %v1358, %v1357
  %v1360 = vmul.f32 0.5, %v1359
  %v1361 = vsub.f32 1.5, %v1360
  %v1362 = vmul.f32 %v1357, %v1361
  %vm1363 = vweird.f32 %v1296
  %vm1364 = vweird.f32 %v1357
  %vm1365 = vmor %vm1363, %vm1364
  %v1366 = vsel %vm1365, %v1357, %v1362
  %v1367 = vrsqrt.pop %v1297
  %v1368 = vmul.f32 %v1367, %v1297
  %v1369 = vmul.f32 %v1368, %v1367
  %v1370 = vmul.f32 0.5, %v1369
  %v1371 = vsub.f32 1.5, %v1370
  %v1372 = vmul.f32 %v1367, %v1371
  %vm1373 = vweird.f32 %v1297
  %vm1374 = vweird.f32 %v1367
  %vm1375 = vmor %vm1373, %vm1374
  %v1376 = vsel %vm1375, %v1367, %v1372
  %v1377 = vrsqrt.pop %v1298
  %v1378 = vmul.f32 %v1377, %v1298
  %v1379 = vmul.f32 %v1378, %v1377
  %v1380 = vmul.f32 0.5, %v1379
  %v1381 = vsub.f32 1.5, %v1380
  %v1382 = vmul.f32 %v1377, %v1381
  %vm1383 = vweird.f32 %v1298
  %vm1384 = vweird.f32 %v1377
  %vm1385 = vmor %vm1383, %vm1384
  %v1386 = vsel %vm1385, %v1377, %v1382
  %v1387 = vrsqrt.pop %v1299
  %v1388 = vmul.f32 %v1387, %v1299
  %v1389 = vmul.f32 %v1388, %v1387
  %v1390 = vmul.f32 0.5, %v1389
  %v1391 = vsub.f32 1.5, %v1390
  %v1392 = vmul.f32 %v1387, %v1391
  %vm1393 = vweird.f32 %v1299
  %vm1394 = vweird.f32 %v1387
  %vm1395 = vmor %vm1393, %vm1394
  %v1396 = vsel %vm1395, %v1387, %v1392
  %v1397 = vrsqrt.pop %v1300
  %v1398 = vmul.f32 %v1397, %v1300
  %v1399 = vmul.f32 %v1398, %v1397
  %v1400 = vmul.f32 0.5, %v1399
  %v1401 = vsub.f32 1.5, %v1400
  %v1402 = vmul.f32 %v1397, %v1401
  %vm1403 = vweird.f32 %v1300
  %vm1404 = vweird.f32 %v1397
  %vm1405 = vmor %vm1403, %vm1404
  %v1406 = vsel %vm1405, %v1397, %v1402
  %v1407 = vrsqrt.pop %v1301
  %v1408 = vmul.f32 %v1407, %v1301
  %v1409 = vmul.f32 %v1408, %v1407
  %v1410 = vmul.f32 0.5, %v1409
  %v1411 = vsub.f32 1.5, %v1410
  %v1412 = vmul.f32 %v1407, %v1411
  %vm1413 = vweird.f32 %v1301
  %vm1414 = vweird.f32 %v1407
  %vm1415 = vmor %vm1413, %vm1414
  %v1416 = vsel %vm1415, %v1407, %v1412
  %v1417 = vrsqrt.pop %v1302
  %v1418 = vmul.f32 %v1417, %v1302
  %v1419 = vmul.f32 %v1418, %v1417
  %v1420 = vmul.f32 0.5, %v1419
  %v1421 = vsub.f32 1.5, %v1420
  %v1422 = vmul.f32 %v1417, %v1421
  %vm1423 = vweird.f32 %v1302
  %vm1424 = vweird.f32 %v1417
  %vm1425 = vmor %vm1423, %vm1424
  %v1426 = vsel %vm1425, %v1417, %v1422
  %v1427 = vrsqrt.pop %v1303
  %v1428 = vmul.f32 %v1427, %v1303
  %v1429 = vmul.f32 %v1428, %v1427
  %v1430 = vmul.f32 0.5, %v1429
  %v1431 = vsub.f32 1.5, %v1430
  %v1432 = vmul.f32 %v1427, %v1431
  %vm1433 = vweird.f32 %v1303
  %vm1434 = vweird.f32 %v1427
  %vm1435 = vmor %vm1433, %vm1434
  %v1436 = vsel %vm1435, %v1427, %v1432
  %v1437 = vrsqrt.pop %v1304
  %v1438 = vmul.f32 %v1437, %v1304
  %v1439 = vmul.f32 %v1438, %v1437
  %v1440 = vmul.f32 0.5, %v1439
  %v1441 = vsub.f32 1.5, %v1440
  %v1442 = vmul.f32 %v1437, %v1441
  %vm1443 = vweird.f32 %v1304
  %vm1444 = vweird.f32 %v1437
  %vm1445 = vmor %vm1443, %vm1444
  %v1446 = vsel %vm1445, %v1437, %v1442
  %v1447 = vrsqrt.pop %v1305
  %v1448 = vmul.f32 %v1447, %v1305
  %v1449 = vmul.f32 %v1448, %v1447
  %v1450 = vmul.f32 0.5, %v1449
  %v1451 = vsub.f32 1.5, %v1450
  %v1452 = vmul.f32 %v1447, %v1451
  %vm1453 = vweird.f32 %v1305
  %vm1454 = vweird.f32 %v1447
  %vm1455 = vmor %vm1453, %vm1454
  %v1456 = vsel %vm1455, %v1447, %v1452
  %v1457 = vrsqrt.pop %v1306
  %v1458 = vmul.f32 %v1457, %v1306
  %v1459 = vmul.f32 %v1458, %v1457
  %v1460 = vmul.f32 0.5, %v1459
  %v1461 = vsub.f32 1.5, %v1460
  %v1462 = vmul.f32 %v1457, %v1461
  %vm1463 = vweird.f32 %v1306
  %vm1464 = vweird.f32 %v1457
  %vm1465 = vmor %vm1463, %vm1464
  %v1466 = vsel %vm1465, %v1457, %v1462
  %v1467 = vmul.f32 %v1179, %v1316
  %v1468 = vmul.f32 %v1180, %v1316
  %v1469 = vmul.f32 %v1181, %v1326
  %v1470 = vmul.f32 %v1182, %v1326
  %v1471 = vmul.f32 %v1183, %v1336
  %v1472 = vmul.f32 %v1184, %v1336
  %v1473 = vmul.f32 %v1185, %v1346
  %v1474 = vmul.f32 %v1186, %v1346
  %v1475 = vmul.f32 %v1187, %v1356
  %v1476 = vmul.f32 %v1188, %v1356
  %v1477 = vmul.f32 %v1189, %v1366
  %v1478 = vmul.f32 %v1190, %v1366
  %v1479 = vmul.f32 %v1191, %v1376
  %v1480 = vmul.f32 %v1192, %v1376
  %v1481 = vmul.f32 %v1193, %v1386
  %v1482 = vmul.f32 %v1194, %v1386
  %v1483 = vmul.f32 %v1195, %v1396
  %v1484 = vmul.f32 %v1196, %v1396
  %v1485 = vmul.f32 %v1197, %v1406
  %v1486 = vmul.f32 %v1198, %v1406
  %v1487 = vmul.f32 %v1199, %v1416
  %v1488 = vmul.f32 %v1200, %v1416
  %v1489 = vmul.f32 %v1201, %v1426
  %v1490 = vmul.f32 %v1202, %v1426
  %v1491 = vmul.f32 %v1203, %v1436
  %v1492 = vmul.f32 %v1204, %v1436
  %v1493 = vmul.f32 %v1205, %v1446
  %v1494 = vmul.f32 %v1206, %v1446
  %v1495 = vmul.f32 %v1207, %v1456
  %v1496 = vmul.f32 %v1208, %v1456
  %v1497 = vmul.f32 %v1209, %v1466
  %v1498 = vmul.f32 %v1210, %v1466
  %1499 = vst [vmem:[%s5] sm:$0xff] %v1467
  %1500 = vst [vmem:[%s5 + $0x8] sm:$0xff] %v1468
  %1501 = vst [vmem:[%s5 + $0x10] sm:$0xff] %v1469
  %1502 = vst [vmem:[%s5 + $0x18] sm:$0xff] %v1470
  %1503 = vst [vmem:[%s5 + $0x20] sm:$0xff] %v1471
  %1504 = vst [vmem:[%s5 + $0x28] sm:$0xff] %v1472
  %1505 = vst [vmem:[%s5 + $0x30] sm:$0xff] %v1473
  %1506 = vst [vmem:[%s5 + $0x38] sm:$0xff] %v1474
  %1507 = vst [vmem:[%s5 + $0x40] sm:$0xff] %v1475
  %1508 = vst [vmem:[%s5 + $0x48] sm:$0xff] %v1476
  %1509 = vst [vmem:[%s5 + $0x50] sm:$0xff] %v1477
  %1510 = vst [vmem:[%s5 + $0x58] sm:$0xff] %v1478
  %1511 = vst [vmem:[%s5 + $0x60] sm:$0xff] %v1479
  %1512 = vst [vmem:[%s5 + $0x68] sm:$0xff] %v1480
  %1513 = vst [vmem:[%s5 + $0x70] sm:$0xff] %v1481
  %1514 = vst [vmem:[%s5 + $0x78] sm:$0xff] %v1482
  %1515 = vst [vmem:[%s5 + $0x80] sm:$0xff] %v1483
  %1516 = vst [vmem:[%s5 + $0x88] sm:$0xff] %v1484
  %1517 = vst [vmem:[%s5 + $0x90] sm:$0xff] %v1485
  %1518 = vst [vmem:[%s5 + $0x98] sm:$0xff] %v1486
  %1519 = vst [vmem:[%s5 + $0xa0] sm:$0xff] %v1487
  %1520 = vst [vmem:[%s5 + $0xa8] sm:$0xff] %v1488
  %1521 = vst [vmem:[%s5 + $0xb0] sm:$0xff] %v1489
  %1522 = vst [vmem:[%s5 + $0xb8] sm:$0xff] %v1490
  %1523 = vst [vmem:[%s5 + $0xc0] sm:$0xff] %v1491
  %1524 = vst [vmem:[%s5 + $0xc8] sm:$0xff] %v1492
  %1525 = vst [vmem:[%s5 + $0xd0] sm:$0xff] %v1493
  %1526 = vst [vmem:[%s5 + $0xd8] sm:$0xff] %v1494
  %1527 = vst [vmem:[%s5 + $0xe0] sm:$0xff] %v1495
  %1528 = vst [vmem:[%s5 + $0xe8] sm:$0xff] %v1496
  %1529 = vst [vmem:[%s5 + $0xf0] sm:$0xff] %v1497
  %1530 = vst [vmem:[%s5 + $0xf8] sm:$0xff] %v1498
  %s1531 = sld [smem:[#allocation3]]
  %v1532 = vstv %s1531
  %v1533 = vmul.f32 %v1467, %v1532
  %v1534 = vmul.f32 %v1468, %v1532
  %v1535 = vmul.f32 %v1469, %v1532
  %v1536 = vmul.f32 %v1470, %v1532
  %v1537 = vmul.f32 %v1471, %v1532
  %v1538 = vmul.f32 %v1472, %v1532
  %v1539 = vmul.f32 %v1473, %v1532
  %v1540 = vmul.f32 %v1474, %v1532
  %v1541 = vmul.f32 %v1475, %v1532
  %v1542 = vmul.f32 %v1476, %v1532
  %v1543 = vmul.f32 %v1477, %v1532
  %v1544 = vmul.f32 %v1478, %v1532
  %v1545 = vmul.f32 %v1479, %v1532
  %v1546 = vmul.f32 %v1480, %v1532
  %v1547 = vmul.f32 %v1481, %v1532
  %v1548 = vmul.f32 %v1482, %v1532
  %v1549 = vmul.f32 %v1483, %v1532
  %v1550 = vmul.f32 %v1484, %v1532
  %v1551 = vmul.f32 %v1485, %v1532
  %v1552 = vmul.f32 %v1486, %v1532
  %v1553 = vmul.f32 %v1487, %v1532
  %v1554 = vmul.f32 %v1488, %v1532
  %v1555 = vmul.f32 %v1489, %v1532
  %v1556 = vmul.f32 %v1490, %v1532
  %v1557 = vmul.f32 %v1491, %v1532
  %v1558 = vmul.f32 %v1492, %v1532
  %v1559 = vmul.f32 %v1493, %v1532
  %v1560 = vmul.f32 %v1494, %v1532
  %v1561 = vmul.f32 %v1495, %v1532
  %v1562 = vmul.f32 %v1496, %v1532
  %v1563 = vmul.f32 %v1497, %v1532
  %v1564 = vmul.f32 %v1498, %v1532
  %v1565 = vpack.c.bf16 %v1534, %v1533
  %v1566 = vpack.c.bf16 %v1536, %v1535
  %v1567 = vpack.c.bf16 %v1538, %v1537
  %v1568 = vpack.c.bf16 %v1540, %v1539
  %v1569 = vpack.c.bf16 %v1542, %v1541
  %v1570 = vpack.c.bf16 %v1544, %v1543
  %v1571 = vpack.c.bf16 %v1546, %v1545
  %v1572 = vpack.c.bf16 %v1548, %v1547
  %v1573 = vpack.c.bf16 %v1550, %v1549
  %v1574 = vpack.c.bf16 %v1552, %v1551
  %v1575 = vpack.c.bf16 %v1554, %v1553
  %v1576 = vpack.c.bf16 %v1556, %v1555
  %v1577 = vpack.c.bf16 %v1558, %v1557
  %v1578 = vpack.c.bf16 %v1560, %v1559
  %v1579 = vpack.c.bf16 %v1562, %v1561
  %v1580 = vpack.c.bf16 %v1564, %v1563
  %1581 = vst [vmem:[%s6] sm:$0xff] %v1565
  %1582 = vst [vmem:[%s6 + $0x8] sm:$0xff] %v1566
  %1583 = vst [vmem:[%s6 + $0x10] sm:$0xff] %v1567
  %1584 = vst [vmem:[%s6 + $0x18] sm:$0xff] %v1568
  %1585 = vst [vmem:[%s6 + $0x20] sm:$0xff] %v1569
  %1586 = vst [vmem:[%s6 + $0x28] sm:$0xff] %v1570
  %1587 = vst [vmem:[%s6 + $0x30] sm:$0xff] %v1571
  %1588 = vst [vmem:[%s6 + $0x38] sm:$0xff] %v1572
  %1589 = vst [vmem:[%s6 + $0x40] sm:$0xff] %v1573
  %1590 = vst [vmem:[%s6 + $0x48] sm:$0xff] %v1574
  %1591 = vst [vmem:[%s6 + $0x50] sm:$0xff] %v1575
  %1592 = vst [vmem:[%s6 + $0x58] sm:$0xff] %v1576
  %1593 = vst [vmem:[%s6 + $0x60] sm:$0xff] %v1577
  %1594 = vst [vmem:[%s6 + $0x68] sm:$0xff] %v1578
  %1595 = vst [vmem:[%s6 + $0x70] sm:$0xff] %v1579
  %1596 = vst [vmem:[%s6 + $0x78] sm:$0xff] %v1580
  // Predicated region
  $region18: #{global_discriminator_dot.6} parent=0 // pred_check
    _
  $region19: #{global_discriminator_dot.6} parent=0 // pred_check_branch
    %1598 = sbr.rel (0) target = $region21
  $region20: #{global_discriminator_dot.6} parent=0 // pred_region
    _
  $region21: #{global_discriminator_dot.6} parent=0 // pred_fallthru
    _
  // Predicated region
  $region22: #{global_discriminator_dot.6} parent=0 // pred_check
    _
  $region23: #{global_discriminator_dot.6} parent=0 // pred_check_branch
    %1600 = sbr.rel (0) target = $region25
  $region24: #{global_discriminator_dot.6} parent=0 // pred_region
    _
  $region25: #{global_discriminator_dot.6} parent=0 // pred_fallthru
    _
  // Predicated region
  $region26: #{global_discriminator_dot.6} parent=0 // pred_check
    _
  $region27: #{global_discriminator_dot.6} parent=0 // pred_check_branch
    %1602 = sbr.rel (0) target = $region29
  $region28: #{global_discriminator_dot.6} parent=0 // pred_region
    _
  $region29: #{global_discriminator_dot.6} parent=0 // pred_fallthru
    _
  // Predicated region
  $region30: #{global_discriminator_dot.6} parent=0 // pred_check
    _
  $region31: #{global_discriminator_dot.6} parent=0 // pred_check_branch
    %1604 = sbr.rel (0) target = $region33
  $region32: #{global_discriminator_dot.6} parent=0 // pred_region
    _
  $region33: #{global_discriminator_dot.6} parent=0 // pred_fallthru
    _

</llo_original>
